<compile_context>
chip_gen: v5e
topology: v5e:2x2
jax: 0.10.0
libtpu: 0.0.40
codegen_flags: <defaults>
</compile_context>

<pallas_src>
import functools

import jax
import jax.numpy as jnp
from jax import lax
from jax.experimental import pallas as pl
from jax.experimental.pallas import tpu as pltpu


# ----------------------------------------------------------------------------
# Kernel 1: fused 4-phase transposed-conv matmul (MXU, f32 accumulation) +
#           per-block partial BatchNorm statistics (no carried accumulator).
# ----------------------------------------------------------------------------
def _convt_matmul_kernel(p_ref, w_ref, y_ref, stats_ref):
    y = jnp.dot(p_ref[...], w_ref[...], preferred_element_type=jnp.float32)
    y_ref[...] = y                                        # (tm, 4*Cout) f32
    s1 = jnp.sum(y, axis=0, keepdims=True)                # (1, 4*Cout)
    s2 = jnp.sum(y * y, axis=0, keepdims=True)            # (1, 4*Cout)
    stats_ref[...] = jnp.concatenate([s1, s2], axis=0)[None]


# ----------------------------------------------------------------------------
# Kernel 2: per-channel affine (BN scale/shift precomputed in JAX) + LeakyReLU
# ----------------------------------------------------------------------------
def _bn_lrelu_kernel(y_ref, scale_ref, shift_ref, o_ref, *, slope):
    yn = y_ref[...] * scale_ref[...] + shift_ref[...]     # (tm, 4*Cout)
    o_ref[...] = jnp.where(yn >= 0, yn, slope * yn)


# ----------------------------------------------------------------------------
# Wrapper
# ----------------------------------------------------------------------------
def upconv_forward(x, w, b, gamma, beta, *, eps=1e-5, slope=0.2, tm=512,
                   compute_dtype=jnp.bfloat16):
    """x: (N, Cin, H, W) NCHW f32.  w: (Cin, Cout, 4, 4) (PyTorch
    ConvTranspose2d layout).  Returns (N, Cout, 2H, 2W) f32 (NCHW)."""
    del b  # ConvTranspose2d bias cancels under batch-stat BatchNorm.
    N, Cin, H, W = x.shape
    Cout = w.shape[1]
    M = N * H * W
    if M < tm:
        tm = M
    assert M % tm == 0, "N*H*W must be a multiple of the row tile"
    K = 9 * Cin
    P4 = 4 * Cout

    # --- im2col: single 3x3-window patch matrix of the padded input ---------
    # Built directly in the compute dtype so the bf16 path never carries an
    # f32-sized intermediate through XLA.
    x_nhwc = jnp.transpose(x, (0, 2, 3, 1)).astype(compute_dtype)
    xp = jnp.pad(x_nhwc, ((0, 0), (1, 1), (1, 1), (0, 0)))
    cols = [xp[:, sh:sh + H, sw:sw + W, :]
            for sh in range(3) for sw in range(3)]
    patches = jnp.concatenate(cols, axis=-1).reshape(M, K)

    # --- block-sparse big weight: (9*Cin, 4*Cout) ----------------------------
    # Output phase (ph, pw) at input position (a, b) reads padded-input taps
    # (a+sh, b+sw) with sh in {ph, ph+1}, sw in {pw, pw+1} and kernel index
    # (3+ph-2*sh, 3+pw-2*sw); all other tap blocks are zero.
    wbig = jnp.zeros((K, P4), jnp.float32)
    for ph in range(2):
        for pw in range(2):
            for sh in (ph, ph + 1):
                for sw in (pw, pw + 1):
                    kh = 3 + ph - 2 * sh
                    kw = 3 + pw - 2 * sw
                    r0 = (sh * 3 + sw) * Cin
                    c0 = (ph * 2 + pw) * Cout
                    wbig = wbig.at[r0:r0 + Cin, c0:c0 + Cout].set(
                        w[:, :, kh, kw].astype(jnp.float32))
    wbig = wbig.astype(compute_dtype)

    nblk = M // tm
    grid = (nblk,)
    cparams = pltpu.CompilerParams(dimension_semantics=("parallel",),
                                   vmem_limit_bytes=64 * 1024 * 1024)

    # --- Pallas kernel 1: matmul + per-block partial BN statistics ----------
    y, partial_stats = pl.pallas_call(
        _convt_matmul_kernel,
        out_shape=(jax.ShapeDtypeStruct((M, P4), jnp.float32),
                   jax.ShapeDtypeStruct((nblk, 2, P4), jnp.float32)),
        grid_spec=pltpu.PrefetchScalarGridSpec(
            num_scalar_prefetch=0,
            grid=grid,
            in_specs=[
                pl.BlockSpec((tm, K), lambda m: (m, 0)),
                pl.BlockSpec((K, P4), lambda m: (0, 0)),
            ],
            out_specs=(
                pl.BlockSpec((tm, P4), lambda m: (m, 0)),
                pl.BlockSpec((1, 2, P4), lambda m: (m, 0, 0)),
            ),
        ),
        compiler_params=cparams,
    )(patches, wbig)

    # --- tiny JAX reduction: fold partial stats into BN scale/shift ----------
    stats = jnp.sum(partial_stats, axis=0)                    # (2, 4*Cout)
    count = 4.0 * M                                           # N * 2H * 2W
    sums = jnp.sum(stats[0].reshape(4, Cout), axis=0)
    sumsq = jnp.sum(stats[1].reshape(4, Cout), axis=0)
    mean = sums / count
    var = sumsq / count - mean * mean                         # biased variance
    scale = gamma.astype(jnp.float32) * lax.rsqrt(var + eps)
    shift = beta.astype(jnp.float32) - mean * scale
    scale4 = jnp.tile(scale, 4).reshape(1, P4)                # per (phase, co)
    shift4 = jnp.tile(shift, 4).reshape(1, P4)

    # --- Pallas kernel 2: affine + LeakyReLU (output aliases y's buffer) ----
    kernel2 = functools.partial(_bn_lrelu_kernel, slope=slope)
    y_act = pl.pallas_call(
        kernel2,
        out_shape=jax.ShapeDtypeStruct((M, P4), jnp.float32),
        grid_spec=pltpu.PrefetchScalarGridSpec(
            num_scalar_prefetch=0,
            grid=grid,
            in_specs=[
                pl.BlockSpec((tm, P4), lambda m: (m, 0)),
                pl.BlockSpec((1, P4), lambda m: (0, 0)),
                pl.BlockSpec((1, P4), lambda m: (0, 0)),
            ],
            out_specs=pl.BlockSpec((tm, P4), lambda m: (m, 0)),
        ),
        input_output_aliases={0: 0},
        compiler_params=cparams,
    )(y, scale4, shift4)

    # --- reassemble to PyTorch NCHW (single XLA transpose) -------------------
    y6 = y_act.reshape(N, H, W, 2, 2, Cout)        # (n, h, w, ph, pw, co)
    out = jnp.transpose(y6, (0, 5, 1, 3, 2, 4))    # (n, co, h, ph, w, pw)
    return out.reshape(N, Cout, 2 * H, 2 * W)


# ----------------------------------------------------------------------------
# Pure-JAX reference (dilate-and-correlate ConvTranspose2d, WITH bias)
# ----------------------------------------------------------------------------
def upconv_reference(x, w, b, gamma, beta, *, eps=1e-5, slope=0.2):
    N, Cin, H, W = x.shape
    Cout = w.shape[1]
    xd = jnp.zeros((N, Cin, 2 * H - 1, 2 * W - 1), jnp.float32)
    xd = xd.at[:, :, ::2, ::2].set(x.astype(jnp.float32))
    xdp = jnp.pad(xd, ((0, 0), (0, 0), (2, 2), (2, 2)))
    wf = w[:, :, ::-1, ::-1]
    y = jnp.zeros((N, Cout, 2 * H, 2 * W), jnp.float32)
    for kh in range(4):
        for kw in range(4):
            y = y + jnp.einsum('nihw,io->nohw',
                               xdp[:, :, kh:kh + 2 * H, kw:kw + 2 * W],
                               wf[:, :, kh, kw])
    y = y + b[None, :, None, None]
    mean = jnp.mean(y, axis=(0, 2, 3), keepdims=True)
    var = jnp.mean((y - mean) ** 2, axis=(0, 2, 3), keepdims=True)
    yn = ((y - mean) / jnp.sqrt(var + eps) * gamma[None, :, None, None]
          + beta[None, :, None, None])
    return jnp.where(yn >= 0, yn, slope * yn)


if __name__ == "__main__":
    nin, nout = 32, 64          # K = 9*nin = 288, lane dim = 4*nout = 256
    N, H, W = 2, 16, 16

    key = jax.random.PRNGKey(0)
    kx, kw, kb, kg, kbeta = jax.random.split(key, 5)
    x = jax.random.normal(kx, (N, nin, H, W), dtype=jnp.float32)
    # ConvTranspose2d weight layout: (in_channels, out_channels, kH, kW)
    w = 0.1 * jax.random.normal(kw, (nin, nout, 4, 4), dtype=jnp.float32)
    b = 0.1 * jax.random.normal(kb, (nout,), dtype=jnp.float32)
    gamma = 1.0 + 0.1 * jax.random.normal(kg, (nout,), dtype=jnp.float32)
    beta = 0.1 * jax.random.normal(kbeta, (nout,), dtype=jnp.float32)

    ref = upconv_reference(x, w, b, gamma, beta)

    # 1) f32 MXU path: checks the algorithm (incl. bias cancellation) tightly.
    fwd_f32 = jax.jit(functools.partial(upconv_forward, tm=256,
                                        compute_dtype=jnp.float32))
    out_f32 = jax.block_until_ready(fwd_f32(x, w, b, gamma, beta))
    assert out_f32.shape == (N, nout, 2 * H, 2 * W), out_f32.shape
    err_f32 = float(jnp.max(jnp.abs(out_f32 - ref)))
    if err_f32 > 1e-3:
        raise AssertionError(f"f32 Pallas path mismatch vs reference: {err_f32}")

    # 2) bf16 MXU path (production/perf path): f32 accumulation, ~0.3% rel err.
    fwd_bf16 = jax.jit(functools.partial(upconv_forward, tm=256,
                                         compute_dtype=jnp.bfloat16))
    out_bf16 = jax.block_until_ready(fwd_bf16(x, w, b, gamma, beta))
    err_bf16 = float(jnp.max(jnp.abs(out_bf16 - ref)))
    if err_bf16 > 3e-2:
        raise AssertionError(f"bf16 Pallas path mismatch vs reference: {err_bf16}")

    print("KERNEL_OK")
</pallas_src>

<mosaic_0001>
module attributes {stable_mosaic.version = 11 : i64} {
  func.func @_convt_matmul_kernel(%arg0: i32, %arg1: memref<256x288xf32, #tpu.memory_space<vmem>>, %arg2: memref<288x256xf32, #tpu.memory_space<vmem>>, %arg3: memref<256x256xf32, #tpu.memory_space<vmem>>, %arg4: memref<1x2x256xf32, #tpu.memory_space<vmem>>) attributes {dimension_semantics = [#tpu.dimension_semantics<parallel>], iteration_bounds = array<i64: 2>, scalar_prefetch = 0 : i64, scratch_operands = 0 : i64, tpu.core_type = #tpu.core_type<tc>, window_params = [{transform_indices = @transform_0, window_bounds = array<i64: 256, 288>}, {pipeline_mode = #tpu.pipeline_mode<synchronous>, transform_indices = @transform_1, window_bounds = array<i64: 288, 256>}, {transform_indices = @transform_2, window_bounds = array<i64: 256, 256>}, {transform_indices = @transform_3, window_bounds = array<i64: 1, 2, 256>}]} {
    %c0 = arith.constant 0 : index
    %c0_0 = arith.constant 0 : index
    %0 = vector.load %arg1[%c0, %c0_0] : memref<256x288xf32, #tpu.memory_space<vmem>>, vector<256x288xf32>
    %c0_1 = arith.constant 0 : index
    %c0_2 = arith.constant 0 : index
    %1 = vector.load %arg2[%c0_1, %c0_2] : memref<288x256xf32, #tpu.memory_space<vmem>>, vector<288x256xf32>
    %cst = arith.constant dense<0.000000e+00> : vector<256x256xf32>
    %2 = tpu.matmul %0, %1, %cst {dimension_numbers = #tpu.dot_dimension_numbers<[1], [0], [0], [1], [0, 0, 1, 1], [], []>} : vector<256x288xf32>, vector<288x256xf32>, vector<256x256xf32> -> vector<256x256xf32>
    %c0_3 = arith.constant 0 : index
    %c0_4 = arith.constant 0 : index
    %3 = vector.load %arg3[%c0_3, %c0_4] : memref<256x256xf32, #tpu.memory_space<vmem>>, vector<256x256xf32>
    tpu.vector_store %arg3[%c0_3, %c0_4], %2 {strides = array<i32>} : memref<256x256xf32, #tpu.memory_space<vmem>>, vector<256x256xf32>,
    %cst_5 = arith.constant dense<0.000000e+00> : vector<256xf32>
    %4 = vector.multi_reduction <add>, %2, %cst_5 [0] : vector<256x256xf32> to vector<256xf32>
    %5 = vector.shape_cast %4 : vector<256xf32> to vector<1x256xf32>
    %6 = arith.mulf %2, %2 : vector<256x256xf32>
    %cst_6 = arith.constant dense<0.000000e+00> : vector<256xf32>
    %7 = vector.multi_reduction <add>, %6, %cst_6 [0] : vector<256x256xf32> to vector<256xf32>
    %8 = vector.shape_cast %7 : vector<256xf32> to vector<1x256xf32>
    %9 = tpu.concatenate %5, %8 in 0 : vector<1x256xf32>, vector<1x256xf32> -> vector<2x256xf32>
    %10 = vector.shape_cast %9 : vector<2x256xf32> to vector<1x2x256xf32>
    %c0_7 = arith.constant 0 : index
    %c0_8 = arith.constant 0 : index
    %c0_9 = arith.constant 0 : index
    %11 = vector.load %arg4[%c0_7, %c0_8, %c0_9] : memref<1x2x256xf32, #tpu.memory_space<vmem>>, vector<1x2x256xf32>
    tpu.vector_store %arg4[%c0_7, %c0_8, %c0_9], %10 {strides = array<i32>} : memref<1x2x256xf32, #tpu.memory_space<vmem>>, vector<1x2x256xf32>,
    return
  }
  func.func @transform_0(%arg0: i32) -> (i32, i32) {
    %c0_i32 = arith.constant 0 : i32
    %c0_i32_0 = arith.constant 0 : i32
    return %arg0, %c0_i32 : i32, i32
  }
  func.func @transform_1(%arg0: i32) -> (i32, i32) {
    %c0_i32 = arith.constant 0 : i32
    %c0_i32_0 = arith.constant 0 : i32
    %c0_i32_1 = arith.constant 0 : i32
    return %c0_i32, %c0_i32_0 : i32, i32
  }
  func.func @transform_2(%arg0: i32) -> (i32, i32) {
    %c0_i32 = arith.constant 0 : i32
    %c0_i32_0 = arith.constant 0 : i32
    return %arg0, %c0_i32 : i32, i32
  }
  func.func @transform_3(%arg0: i32) -> (i32, i32, i32) {
    %c0_i32 = arith.constant 0 : i32
    %c0_i32_0 = arith.constant 0 : i32
    %c0_i32_1 = arith.constant 0 : i32
    return %arg0, %c0_i32, %c0_i32_0 : i32, i32, i32
  }
}

module attributes {stable_mosaic.version = 11 : i64} {
  func.func @_bn_lrelu_kernel(%arg0: i32, %arg1: memref<256x256xf32, #tpu.memory_space<vmem>>, %arg2: memref<1x256xf32, #tpu.memory_space<vmem>>, %arg3: memref<1x256xf32, #tpu.memory_space<vmem>>, %arg4: memref<256x256xf32, #tpu.memory_space<vmem>>) attributes {dimension_semantics = [#tpu.dimension_semantics<parallel>], iteration_bounds = array<i64: 2>, scalar_prefetch = 0 : i64, scratch_operands = 0 : i64, tpu.core_type = #tpu.core_type<tc>, window_params = [{transform_indices = @transform_0, window_bounds = array<i64: 256, 256>}, {pipeline_mode = #tpu.pipeline_mode<synchronous>, transform_indices = @transform_1, window_bounds = array<i64: 1, 256>}, {pipeline_mode = #tpu.pipeline_mode<synchronous>, transform_indices = @transform_2, window_bounds = array<i64: 1, 256>}, {transform_indices = @transform_3, window_bounds = array<i64: 256, 256>}]} {
    %c0 = arith.constant 0 : index
    %c0_0 = arith.constant 0 : index
    %0 = vector.load %arg1[%c0, %c0_0] : memref<256x256xf32, #tpu.memory_space<vmem>>, vector<256x256xf32>
    %c0_1 = arith.constant 0 : index
    %c0_2 = arith.constant 0 : index
    %1 = vector.load %arg2[%c0_1, %c0_2] : memref<1x256xf32, #tpu.memory_space<vmem>>, vector<1x256xf32>
    %2 = vector.broadcast %1 : vector<1x256xf32> to vector<256x256xf32>
    %3 = arith.mulf %0, %2 : vector<256x256xf32>
    %c0_3 = arith.constant 0 : index
    %c0_4 = arith.constant 0 : index
    %4 = vector.load %arg3[%c0_3, %c0_4] : memref<1x256xf32, #tpu.memory_space<vmem>>, vector<1x256xf32>
    %5 = vector.broadcast %4 : vector<1x256xf32> to vector<256x256xf32>
    %6 = arith.addf %3, %5 : vector<256x256xf32>
    %cst = arith.constant 0.000000e+00 : f32
    %7 = vector.broadcast %cst : f32 to vector<256x256xf32>
    %8 = arith.cmpf oge, %6, %7 : vector<256x256xf32>
    %cst_5 = arith.constant 2.000000e-01 : f32
    %9 = vector.broadcast %cst_5 : f32 to vector<256x256xf32>
    %10 = arith.mulf %9, %6 : vector<256x256xf32>
    %11 = arith.select %8, %6, %10 : vector<256x256xi1>, vector<256x256xf32>
    %c0_6 = arith.constant 0 : index
    %c0_7 = arith.constant 0 : index
    %12 = vector.load %arg4[%c0_6, %c0_7] : memref<256x256xf32, #tpu.memory_space<vmem>>, vector<256x256xf32>
    tpu.vector_store %arg4[%c0_6, %c0_7], %11 {strides = array<i32>} : memref<256x256xf32, #tpu.memory_space<vmem>>, vector<256x256xf32>,
    return
  }
  func.func @transform_0(%arg0: i32) -> (i32, i32) {
    %c0_i32 = arith.constant 0 : i32
    %c0_i32_0 = arith.constant 0 : i32
    return %arg0, %c0_i32 : i32, i32
  }
  func.func @transform_1(%arg0: i32) -> (i32, i32) {
    %c0_i32 = arith.constant 0 : i32
    %c0_i32_0 = arith.constant 0 : i32
    %c0_i32_1 = arith.constant 0 : i32
    return %c0_i32, %c0_i32_0 : i32, i32
  }
  func.func @transform_2(%arg0: i32) -> (i32, i32) {
    %c0_i32 = arith.constant 0 : i32
    %c0_i32_0 = arith.constant 0 : i32
    %c0_i32_1 = arith.constant 0 : i32
    return %c0_i32, %c0_i32_0 : i32, i32
  }
  func.func @transform_3(%arg0: i32) -> (i32, i32) {
    %c0_i32 = arith.constant 0 : i32
    %c0_i32_0 = arith.constant 0 : i32
    return %arg0, %c0_i32 : i32, i32
  }
}

</mosaic_0001>

<llo_original>
// kernel: squeeze.34
$region0: #{squeeze.34}
  %s0 = inlined_call_operand.vmem [shape: f32[256], index: 0, kind: input, shape index: {}]
  %s1 = inlined_call_operand.vmem [shape: f32[4,64], index: 1, kind: output, shape index: {}]
  $region1: #{squeeze.34} parent=0
    #allocation0 [shape = 'u8[4096]{0}', space=vmem, size = 0x1000, scoped, tag = 'scoped mem for output reshape']
    #allocation1 [shape = 'u8[4096]{0}', space=vmem, size = 0x1000, scoped, tag = 'scoped mem for input reshape']
    %s3 = ssub.s32 4, 1
    %v4 = vld [vmem:[%s0] sm:%s3]
    %5 = vst [vmem:[#allocation1] sm:%s3] %v4
    %v6 = vld [vmem:[#allocation1] sm:$0x3]
    %vm7 = vcmask 523264
    %8 = vst.msk [vmem:[#allocation0] ss:$2 sm:$0x3] %vm7, %v6
    %v9 = vld [vmem:[#allocation1] sm:$0x3]
    %10 = vrot.lane.b32.xlu0 %v9, 64
    %v11 = vpop.permute.xlu0 %10
    %vm12 = vcmask 523264
    %s13 = scalar_lea.vmem [#allocation0], 1
    %14 = vst.msk [vmem:[%s13] ss:$2 sm:$0x3] %vm12, %v11
    %s16 = ssub.s32 16, 1
    %v17 = vld [vmem:[#allocation0] sm:%s16]
    %s19 = ssub.s32 16, 1
    %20 = vst [vmem:[%s1] sm:%s19] %v17

// kernel: tile.13
$region0: #{tile.13}
  #allocation0 [shape = 's32[1]{0}', space=sflag, size = 0x4, scoped, tag = 'scoped memory for tile.13']
  %s0 = inlined_call_operand.vmem [shape: f32[64], index: 0, kind: input, shape index: {}]
  %s1 = inlined_call_operand.vmem [shape: f32[4,64], index: 1, kind: output, shape index: {}]
  // Predicated region
  $region2: #{tile.13} parent=0 // pred_check
    _
  $region3: #{tile.13} parent=0 // pred_check_branch
    %3 = sbr.rel (0) target = $region5
  $region4: #{tile.13} parent=0 // pred_region
    _
  $region5: #{tile.13} parent=0 // pred_fallthru
    _
  %v4 = vld [vmem:[%s0] ss:$0 sm:$0xff]
  %5 = vst [vmem:[%s1] sm:$0xf] %v4

// kernel: tile.14
$region0: #{tile.14}
  %s0 = inlined_call_operand.vmem [shape: f32[4,64], index: 0, kind: input, shape index: {}]
  %s1 = inlined_call_operand.vmem [shape: f32[1,256], index: 1, kind: output, shape index: {}]
  $region1: #{tile.14} parent=0
    #allocation0 [shape = 'u8[8192]{0}', space=vmem, size = 0x2000, scoped, tag = 'scoped mem for output reshape']
    #allocation1 [shape = 'u8[4096]{0}', space=vmem, size = 0x1000, scoped, tag = 'scoped mem for input reshape']
    %s3 = ssub.s32 16, 1
    %v4 = vld [vmem:[%s0] sm:%s3]
    %5 = vst [vmem:[#allocation1] sm:%s3] %v4
    %s6 = smov 3
    %v7 = vld [vmem:[#allocation1] ss:$2 sm:%s6]
    %vm8 = vcmask 523264
    %9 = vst.msk [vmem:[#allocation0] ss:$8 sm:$0x3] %vm8, %v7
    %s10 = scalar_lea.vmem [#allocation1], 1
    %s11 = smov 3
    %v12 = vld [vmem:[%s10] ss:$2 sm:%s11]
    %13 = vrot.lane.b32.xlu0 %v12, 64
    %v14 = vpop.permute.xlu0 %13
    %vm15 = vcmask 1048064
    %16 = vst.msk [vmem:[#allocation0] ss:$8 sm:$0x3] %vm15, %v14
    %s18 = ssub.s32 2, 1
    %v19 = vld [vmem:[#allocation0] sm:%s18]
    %s21 = ssub.s32 2, 1
    %22 = vst [vmem:[%s1] sm:%s21] %v19
    %s23 = scalar_lea.vmem [#allocation0], 8
    %v24 = vld [vmem:[%s23] sm:%s18]
    %s26 = ssub.s32 2, 1
    %s27 = scalar_lea.vmem %s1, 1
    %28 = vst [vmem:[%s27] sm:%s26] %v24

// kernel: upconv_forward.3
$region0: #{upconv_forward.3}
  #allocation0 [shape = 'u32[]', space=smem, size = 0x4, offset = 0x4, fixed_abs, tag = 'smem constant byte address 0x4 - core index']
  #allocation1 [shape = 'u32[72,128]{1,0:T(1,128)}', space=vmem, size = 0x9000, scoped, tag = 'internal scratch']
  %s0 = inlined_call_operand.vmem [shape: f32[512,256], index: 0, kind: input, shape index: {}, may-alias: {0,3}]
  %s1 = inlined_call_operand.vmem [shape: f32[1,256], index: 1, kind: input, shape index: {}]
  %s2 = inlined_call_operand.vmem [shape: f32[1,256], index: 2, kind: input, shape index: {}]
  %s3 = inlined_call_operand.vmem [shape: f32[512,256], index: 3, kind: output, shape index: {}, may-alias: {0,3}]
  %s4 = sld [smem:[#allocation0]]
  $region45: #{upconv_forward.3} parent=0
    _
  %s6 = ssub.s32 1, %s4
  %s7 = scalar_select 0, %s6, %s4
  loop: start=0, step=1, limit=4
  $region2: #{upconv_forward.3} parent=0 // loop_pre_header
    _
  $region3: #{upconv_forward.3} parent=0 // loop_header
    %s9 = sphi 0, %s13
    %p10 = scmp.ge.s32.totalorder %s9, 4
    %s19 = sphi 0, %s21
    %s22 = sphi 0, %s19
    %s23 = sphi 0, %s22
    %s39 = sphi 0, %s23
    %s43 = sphi 0, %s43
    %s45 = sphi 0, %s43
    %s46 = sphi 0, %s45
    %s60 = sphi 0, %s46
    %s64 = sphi 0, %s64
    %s66 = sphi 0, %s64
    %s67 = sphi 0, %s66
    %s81 = sphi 0, %s67
    %s87 = sphi 0, %s89
    %s90 = sphi 0, %s87
    %s91 = sphi 0, %s90
    %s107 = sphi 0, %s91
  $region4: #{upconv_forward.3} parent=0 // loop_header_branch
    %12 = sbr.rel (%p10) target = $region8
  $region5: #{upconv_forward.3} parent=0 // loop_body
    %s14 = ssub.s32 %s9, 1
    %s15 = ssub.s32 %s9, 2
    %s16 = sadd.s32 %s9, 1
    %s17 = ssub.s32 %s9, %s16
    %p18 = scmp.eq.s32.totalorder %s17, 0
    %s20 = sadd.s32 %s19, 1
    %s21 = scalar_select %p18, %s19, %s20
    %p24 = pneg %p18
    %p25 = scmp.eq.s32.totalorder %s9, 1
    %p26 = por %p24, %p25
    %p27 = scmp.ne.s32.totalorder %s19, %s22
    %p28 = scmp.eq.s32.totalorder %s9, 0
    %p29 = por %p27, %p28
    %p30 = scmp.ne.s32.totalorder %s19, %s22
    %p31 = scmp.eq.s32.totalorder %s14, 1
    %p32 = por %p30, %p31
    %p33 = scmp.ne.s32.totalorder %s22, %s23
    %p34 = scmp.eq.s32.totalorder %s14, 0
    %p35 = por %p33, %p34
    %p36 = scmp.ne.s32.totalorder %s22, %s23
    %p37 = scmp.eq.s32.totalorder %s15, 1
    %p38 = por %p36, %p37
    %p40 = scmp.ne.s32.totalorder %s23, %s39
    %p41 = scmp.eq.s32.totalorder %s15, 0
    %p42 = por %p40, %p41
    %s44 = sadd.s32 %s43, 1
    %p47 = scmp.eq.s32.totalorder %s9, 1
    %p48 = scmp.ne.s32.totalorder %s43, %s45
    %p49 = scmp.eq.s32.totalorder %s9, 0
    %p50 = por %p48, %p49
    %p51 = scmp.ne.s32.totalorder %s43, %s45
    %p52 = scmp.eq.s32.totalorder %s14, 1
    %p53 = por %p51, %p52
    %p54 = scmp.ne.s32.totalorder %s45, %s46
    %p55 = scmp.eq.s32.totalorder %s14, 0
    %p56 = por %p54, %p55
    %p57 = scmp.ne.s32.totalorder %s45, %s46
    %p58 = scmp.eq.s32.totalorder %s15, 1
    %p59 = por %p57, %p58
    %p61 = scmp.ne.s32.totalorder %s46, %s60
    %p62 = scmp.eq.s32.totalorder %s15, 0
    %p63 = por %p61, %p62
    %s65 = sadd.s32 %s64, 1
    %p68 = scmp.eq.s32.totalorder %s9, 1
    %p69 = scmp.ne.s32.totalorder %s64, %s66
    %p70 = scmp.eq.s32.totalorder %s9, 0
    %p71 = por %p69, %p70
    %p72 = scmp.ne.s32.totalorder %s64, %s66
    %p73 = scmp.eq.s32.totalorder %s14, 1
    %p74 = por %p72, %p73
    %p75 = scmp.ne.s32.totalorder %s66, %s67
    %p76 = scmp.eq.s32.totalorder %s14, 0
    %p77 = por %p75, %p76
    %p78 = scmp.ne.s32.totalorder %s66, %s67
    %p79 = scmp.eq.s32.totalorder %s15, 1
    %p80 = por %p78, %p79
    %p82 = scmp.ne.s32.totalorder %s67, %s81
    %p83 = scmp.eq.s32.totalorder %s15, 0
    %p84 = por %p82, %p83
    %s85 = ssub.s32 %s9, %s16
    %p86 = scmp.eq.s32.totalorder %s85, 0
    %s88 = sadd.s32 %s87, 1
    %s89 = scalar_select %p86, %s87, %s88
    %p92 = pneg %p86
    %p93 = scmp.eq.s32.totalorder %s9, 1
    %p94 = por %p92, %p93
    %p95 = scmp.ne.s32.totalorder %s87, %s90
    %p96 = scmp.eq.s32.totalorder %s9, 0
    %p97 = por %p95, %p96
    %p98 = scmp.ne.s32.totalorder %s87, %s90
    %p99 = scmp.eq.s32.totalorder %s14, 1
    %p100 = por %p98, %p99
    %p101 = scmp.ne.s32.totalorder %s90, %s91
    %p102 = scmp.eq.s32.totalorder %s14, 0
    %p103 = por %p101, %p102
    %p104 = scmp.ne.s32.totalorder %s90, %s91
    %p105 = scmp.eq.s32.totalorder %s15, 1
    %p106 = por %p104, %p105
    %p108 = scmp.ne.s32.totalorder %s91, %s107
    %p109 = scmp.eq.s32.totalorder %s15, 0
    %p110 = por %p108, %p109
    %p111 = scmp.le.s32.totalorder 1, %s9
    %p112 = scmp.lt.s32.totalorder %s9, 3
    %p113 = pnand %p111, %p112
    %p114 = pneg %p113
    // Predicated region
    $region9: #{upconv_forward.3} parent=5 // pred_check
      _
    $region10: #{upconv_forward.3} parent=5 // pred_check_branch
      %116 = sbr.rel (%p113) target = $region12
    $region11: #{upconv_forward.3} parent=5 // pred_region
      %s117 = ssub.s32 %s9, 1
      // Predicated region
      $region13: #{upconv_forward.3} parent=11 // pred_check
        %p118 = pneg %p56
      $region14: #{upconv_forward.3} parent=11 // pred_check_branch
        %120 = sbr.rel (%p118) target = $region16
      $region15: #{upconv_forward.3} parent=11 // pred_region
        _
      $region16: #{upconv_forward.3} parent=11 // pred_fallthru
        _
      // Predicated region
      $region17: #{upconv_forward.3} parent=11 // pred_check
        %p121 = pneg %p77
      $region18: #{upconv_forward.3} parent=11 // pred_check_branch
        %123 = sbr.rel (%p121) target = $region20
      $region19: #{upconv_forward.3} parent=11 // pred_region
        _
      $region20: #{upconv_forward.3} parent=11 // pred_fallthru
        _
    $region12: #{upconv_forward.3} parent=5 // pred_fallthru
      _
    %p124 = scmp.lt.s32.totalorder %s9, 2
    // Predicated region
    $region21: #{upconv_forward.3} parent=5 // pred_check
      %p125 = pneg %p124
    $region22: #{upconv_forward.3} parent=5 // pred_check_branch
      %127 = sbr.rel (%p125) target = $region24
    $region23: #{upconv_forward.3} parent=5 // pred_region
      // Predicated region
      $region25: #{upconv_forward.3} parent=23 // pred_check
        %p128 = pneg %p29
      $region26: #{upconv_forward.3} parent=23 // pred_check_branch
        %130 = sbr.rel (%p128) target = $region28
      $region27: #{upconv_forward.3} parent=23 // pred_region
        %s131 = smul.u32 32, %s9
        %p132 = scmp.lt.s32.totalorder %s131, 63
        %s133 = scalar_select %p132, %s131, 63
        %s134 = smul.addr %s133, 2
        %s135 = smul.addr %s134, 8
        %s136 = scalar_lea.vmem %s0, %s135
        %s137 = smul.u32 32, %s9
      $region28: #{upconv_forward.3} parent=23 // pred_fallthru
        _
    $region24: #{upconv_forward.3} parent=5 // pred_fallthru
      _
    %p138 = scmp.le.s32.totalorder 1, %s9
    %p139 = scmp.lt.s32.totalorder %s9, 3
    %p140 = pnand %p138, %p139
    %p141 = pneg %p140
    // Predicated region
    $region29: #{upconv_forward.3} parent=5 // pred_check
      _
    $region30: #{upconv_forward.3} parent=5 // pred_check_branch
      %143 = sbr.rel (%p140) target = $region32
    $region31: #{upconv_forward.3} parent=5 // pred_region
      %s144 = ssub.s32 %s9, 1
      %s145 = smul.u32 32, %s14
      %p146 = scmp.lt.s32.totalorder %s145, 63
      %s147 = scalar_select %p146, %s145, 63
      %s148 = smul.addr %s147, 2
      %s149 = smul.addr %s148, 8
      %s150 = scalar_lea.vmem %s0, %s149
      %p151 = pneg %p35
      %p152 = pneg %p32
      %p153 = pneg %p56
      %p154 = pneg %p53
      %p155 = pneg %p77
      %p156 = pneg %p74
      %p157 = pneg %p103
      %p158 = pneg %p100
      %s159 = smul.u32 32, %s14
      %p160 = scmp.lt.s32.totalorder %s159, 63
      %s161 = scalar_select %p160, %s159, 63
      %s162 = smul.addr %s161, 2
      %s163 = smul.addr %s162, 8
      %s164 = scalar_lea.vmem %s3, %s163
      %s165 = smul.u32 32, %s14
      %p166 = scmp.lt.s32.totalorder %s165, 63
      %s167 = scalar_select %p166, %s165, 63
      %s168 = smul.addr %s167, 2
      %s169 = smul.addr %s168, 8
      %s170 = scalar_lea.vmem %s0, %s169
      %s171 = smul.u32 32, %s14
      %s172 = smul.u32 32, %s14
      %p173 = scmp.lt.s32.totalorder %s172, 63
      %s174 = scalar_select %p173, %s172, 63
      %s175 = smul.addr %s174, 2
      %s176 = smul.addr %s175, 8
      %s177 = scalar_lea.vmem %s3, %s176
      %s178 = smul.u32 32, %s14
      %v179 = vld [vmem:[%s170] sm:$0xff]
      %v180 = vld [vmem:[%s170 + $0x8] sm:$0xff]
      %v181 = vld [vmem:[%s170 + $0x10] sm:$0xff]
      %v182 = vld [vmem:[%s170 + $0x18] sm:$0xff]
      %v183 = vld [vmem:[%s170 + $0x20] sm:$0xff]
      %v184 = vld [vmem:[%s170 + $0x28] sm:$0xff]
      %v185 = vld [vmem:[%s170 + $0x30] sm:$0xff]
      %v186 = vld [vmem:[%s170 + $0x38] sm:$0xff]
      %v187 = vld [vmem:[%s170 + $0x40] sm:$0xff]
      %v188 = vld [vmem:[%s170 + $0x48] sm:$0xff]
      %v189 = vld [vmem:[%s170 + $0x50] sm:$0xff]
      %v190 = vld [vmem:[%s170 + $0x58] sm:$0xff]
      %v191 = vld [vmem:[%s170 + $0x60] sm:$0xff]
      %v192 = vld [vmem:[%s170 + $0x68] sm:$0xff]
      %v193 = vld [vmem:[%s170 + $0x70] sm:$0xff]
      %v194 = vld [vmem:[%s170 + $0x78] sm:$0xff]
      %v195 = vld [vmem:[%s170 + $0x80] sm:$0xff]
      %v196 = vld [vmem:[%s170 + $0x88] sm:$0xff]
      %v197 = vld [vmem:[%s170 + $0x90] sm:$0xff]
      %v198 = vld [vmem:[%s170 + $0x98] sm:$0xff]
      %v199 = vld [vmem:[%s170 + $0xa0] sm:$0xff]
      %v200 = vld [vmem:[%s170 + $0xa8] sm:$0xff]
      %v201 = vld [vmem:[%s170 + $0xb0] sm:$0xff]
      %v202 = vld [vmem:[%s170 + $0xb8] sm:$0xff]
      %v203 = vld [vmem:[%s170 + $0xc0] sm:$0xff]
      %v204 = vld [vmem:[%s170 + $0xc8] sm:$0xff]
      %v205 = vld [vmem:[%s170 + $0xd0] sm:$0xff]
      %v206 = vld [vmem:[%s170 + $0xd8] sm:$0xff]
      %v207 = vld [vmem:[%s170 + $0xe0] sm:$0xff]
      %v208 = vld [vmem:[%s170 + $0xe8] sm:$0xff]
      %v209 = vld [vmem:[%s170 + $0xf0] sm:$0xff]
      %v210 = vld [vmem:[%s170 + $0xf8] sm:$0xff]
      %v211 = vld [vmem:[%s170 + $0x100] sm:$0xff]
      %v212 = vld [vmem:[%s170 + $0x108] sm:$0xff]
      %v213 = vld [vmem:[%s170 + $0x110] sm:$0xff]
      %v214 = vld [vmem:[%s170 + $0x118] sm:$0xff]
      %v215 = vld [vmem:[%s170 + $0x120] sm:$0xff]
      %v216 = vld [vmem:[%s170 + $0x128] sm:$0xff]
      %v217 = vld [vmem:[%s170 + $0x130] sm:$0xff]
      %v218 = vld [vmem:[%s170 + $0x138] sm:$0xff]
      %v219 = vld [vmem:[%s170 + $0x140] sm:$0xff]
      %v220 = vld [vmem:[%s170 + $0x148] sm:$0xff]
      %v221 = vld [vmem:[%s170 + $0x150] sm:$0xff]
      %v222 = vld [vmem:[%s170 + $0x158] sm:$0xff]
      %v223 = vld [vmem:[%s170 + $0x160] sm:$0xff]
      %v224 = vld [vmem:[%s170 + $0x168] sm:$0xff]
      %v225 = vld [vmem:[%s170 + $0x170] sm:$0xff]
      %v226 = vld [vmem:[%s170 + $0x178] sm:$0xff]
      %v227 = vld [vmem:[%s170 + $0x180] sm:$0xff]
      %v228 = vld [vmem:[%s170 + $0x188] sm:$0xff]
      %v229 = vld [vmem:[%s170 + $0x190] sm:$0xff]
      %v230 = vld [vmem:[%s170 + $0x198] sm:$0xff]
      %v231 = vld [vmem:[%s170 + $0x1a0] sm:$0xff]
      %v232 = vld [vmem:[%s170 + $0x1a8] sm:$0xff]
      %v233 = vld [vmem:[%s170 + $0x1b0] sm:$0xff]
      %v234 = vld [vmem:[%s170 + $0x1b8] sm:$0xff]
      %v235 = vld [vmem:[%s170 + $0x1c0] sm:$0xff]
      %v236 = vld [vmem:[%s170 + $0x1c8] sm:$0xff]
      %v237 = vld [vmem:[%s170 + $0x1d0] sm:$0xff]
      %v238 = vld [vmem:[%s170 + $0x1d8] sm:$0xff]
      %v239 = vld [vmem:[%s170 + $0x1e0] sm:$0xff]
      %v240 = vld [vmem:[%s170 + $0x1e8] sm:$0xff]
      %v241 = vld [vmem:[%s170 + $0x1f0] sm:$0xff]
      %v242 = vld [vmem:[%s170 + $0x1f8] sm:$0xff]
      %v243 = vld [vmem:[%s1] sm:$0x3]
      %v245 = vperm.slane %v243, 0
      %v246 = vperm.slane %v243, 1
      %v249 = vmul.f32 %v179, %v245
      %v250 = vmul.f32 %v180, %v246
      %v251 = vmul.f32 %v181, %v245
      %v252 = vmul.f32 %v182, %v246
      %v253 = vmul.f32 %v183, %v245
      %v254 = vmul.f32 %v184, %v246
      %v255 = vmul.f32 %v185, %v245
      %v256 = vmul.f32 %v186, %v246
      %v257 = vmul.f32 %v187, %v245
      %v258 = vmul.f32 %v188, %v246
      %v259 = vmul.f32 %v189, %v245
      %v260 = vmul.f32 %v190, %v246
      %v261 = vmul.f32 %v191, %v245
      %v262 = vmul.f32 %v192, %v246
      %v263 = vmul.f32 %v193, %v245
      %v264 = vmul.f32 %v194, %v246
      %v265 = vmul.f32 %v195, %v245
      %v266 = vmul.f32 %v196, %v246
      %v267 = vmul.f32 %v197, %v245
      %v268 = vmul.f32 %v198, %v246
      %v269 = vmul.f32 %v199, %v245
      %v270 = vmul.f32 %v200, %v246
      %v271 = vmul.f32 %v201, %v245
      %v272 = vmul.f32 %v202, %v246
      %v273 = vmul.f32 %v203, %v245
      %v274 = vmul.f32 %v204, %v246
      %v275 = vmul.f32 %v205, %v245
      %v276 = vmul.f32 %v206, %v246
      %v277 = vmul.f32 %v207, %v245
      %v278 = vmul.f32 %v208, %v246
      %v279 = vmul.f32 %v209, %v245
      %v280 = vmul.f32 %v210, %v246
      %v281 = vmul.f32 %v211, %v245
      %v282 = vmul.f32 %v212, %v246
      %v283 = vmul.f32 %v213, %v245
      %v284 = vmul.f32 %v214, %v246
      %v285 = vmul.f32 %v215, %v245
      %v286 = vmul.f32 %v216, %v246
      %v287 = vmul.f32 %v217, %v245
      %v288 = vmul.f32 %v218, %v246
      %v289 = vmul.f32 %v219, %v245
      %v290 = vmul.f32 %v220, %v246
      %v291 = vmul.f32 %v221, %v245
      %v292 = vmul.f32 %v222, %v246
      %v293 = vmul.f32 %v223, %v245
      %v294 = vmul.f32 %v224, %v246
      %v295 = vmul.f32 %v225, %v245
      %v296 = vmul.f32 %v226, %v246
      %v297 = vmul.f32 %v227, %v245
      %v298 = vmul.f32 %v228, %v246
      %v299 = vmul.f32 %v229, %v245
      %v300 = vmul.f32 %v230, %v246
      %v301 = vmul.f32 %v231, %v245
      %v302 = vmul.f32 %v232, %v246
      %v303 = vmul.f32 %v233, %v245
      %v304 = vmul.f32 %v234, %v246
      %v305 = vmul.f32 %v235, %v245
      %v306 = vmul.f32 %v236, %v246
      %v307 = vmul.f32 %v237, %v245
      %v308 = vmul.f32 %v238, %v246
      %v309 = vmul.f32 %v239, %v245
      %v310 = vmul.f32 %v240, %v246
      %v311 = vmul.f32 %v241, %v245
      %v312 = vmul.f32 %v242, %v246
      %v313 = vld [vmem:[%s2] sm:$0x3]
      %v315 = vperm.slane %v313, 0
      %v316 = vperm.slane %v313, 1
      %v319 = vadd.f32 %v249, %v315
      %v320 = vadd.f32 %v250, %v316
      %v321 = vadd.f32 %v251, %v315
      %v322 = vadd.f32 %v252, %v316
      %v323 = vadd.f32 %v253, %v315
      %v324 = vadd.f32 %v254, %v316
      %v325 = vadd.f32 %v255, %v315
      %v326 = vadd.f32 %v256, %v316
      %v327 = vadd.f32 %v257, %v315
      %v328 = vadd.f32 %v258, %v316
      %v329 = vadd.f32 %v259, %v315
      %v330 = vadd.f32 %v260, %v316
      %v331 = vadd.f32 %v261, %v315
      %v332 = vadd.f32 %v262, %v316
      %v333 = vadd.f32 %v263, %v315
      %v334 = vadd.f32 %v264, %v316
      %v335 = vadd.f32 %v265, %v315
      %v336 = vadd.f32 %v266, %v316
      %v337 = vadd.f32 %v267, %v315
      %v338 = vadd.f32 %v268, %v316
      %v339 = vadd.f32 %v269, %v315
      %v340 = vadd.f32 %v270, %v316
      %v341 = vadd.f32 %v271, %v315
      %v342 = vadd.f32 %v272, %v316
      %v343 = vadd.f32 %v273, %v315
      %v344 = vadd.f32 %v274, %v316
      %v345 = vadd.f32 %v275, %v315
      %v346 = vadd.f32 %v276, %v316
      %v347 = vadd.f32 %v277, %v315
      %v348 = vadd.f32 %v278, %v316
      %v349 = vadd.f32 %v279, %v315
      %v350 = vadd.f32 %v280, %v316
      %v351 = vadd.f32 %v281, %v315
      %v352 = vadd.f32 %v282, %v316
      %v353 = vadd.f32 %v283, %v315
      %v354 = vadd.f32 %v284, %v316
      %v355 = vadd.f32 %v285, %v315
      %v356 = vadd.f32 %v286, %v316
      %v357 = vadd.f32 %v287, %v315
      %v358 = vadd.f32 %v288, %v316
      %v359 = vadd.f32 %v289, %v315
      %v360 = vadd.f32 %v290, %v316
      %v361 = vadd.f32 %v291, %v315
      %v362 = vadd.f32 %v292, %v316
      %v363 = vadd.f32 %v293, %v315
      %v364 = vadd.f32 %v294, %v316
      %v365 = vadd.f32 %v295, %v315
      %v366 = vadd.f32 %v296, %v316
      %v367 = vadd.f32 %v297, %v315
      %v368 = vadd.f32 %v298, %v316
      %v369 = vadd.f32 %v299, %v315
      %v370 = vadd.f32 %v300, %v316
      %v371 = vadd.f32 %v301, %v315
      %v372 = vadd.f32 %v302, %v316
      %v373 = vadd.f32 %v303, %v315
      %v374 = vadd.f32 %v304, %v316
      %v375 = vadd.f32 %v305, %v315
      %v376 = vadd.f32 %v306, %v316
      %v377 = vadd.f32 %v307, %v315
      %v378 = vadd.f32 %v308, %v316
      %v379 = vadd.f32 %v309, %v315
      %v380 = vadd.f32 %v310, %v316
      %v381 = vadd.f32 %v311, %v315
      %v382 = vadd.f32 %v312, %v316
      %vm383 = vcmp.ge.f32.partialorder %v319, 0.0
      %vm384 = vcmp.ge.f32.partialorder %v320, 0.0
      %vm385 = vcmp.ge.f32.partialorder %v321, 0.0
      %vm386 = vcmp.ge.f32.partialorder %v322, 0.0
      %vm387 = vcmp.ge.f32.partialorder %v323, 0.0
      %vm388 = vcmp.ge.f32.partialorder %v324, 0.0
      %vm389 = vcmp.ge.f32.partialorder %v325, 0.0
      %vm390 = vcmp.ge.f32.partialorder %v326, 0.0
      %vm391 = vcmp.ge.f32.partialorder %v327, 0.0
      %vm392 = vcmp.ge.f32.partialorder %v328, 0.0
      %vm393 = vcmp.ge.f32.partialorder %v329, 0.0
      %vm394 = vcmp.ge.f32.partialorder %v330, 0.0
      %vm395 = vcmp.ge.f32.partialorder %v331, 0.0
      %vm396 = vcmp.ge.f32.partialorder %v332, 0.0
      %vm397 = vcmp.ge.f32.partialorder %v333, 0.0
      %vm398 = vcmp.ge.f32.partialorder %v334, 0.0
      %vm399 = vcmp.ge.f32.partialorder %v335, 0.0
      %vm400 = vcmp.ge.f32.partialorder %v336, 0.0
      %vm401 = vcmp.ge.f32.partialorder %v337, 0.0
      %vm402 = vcmp.ge.f32.partialorder %v338, 0.0
      %vm403 = vcmp.ge.f32.partialorder %v339, 0.0
      %vm404 = vcmp.ge.f32.partialorder %v340, 0.0
      %vm405 = vcmp.ge.f32.partialorder %v341, 0.0
      %vm406 = vcmp.ge.f32.partialorder %v342, 0.0
      %vm407 = vcmp.ge.f32.partialorder %v343, 0.0
      %vm408 = vcmp.ge.f32.partialorder %v344, 0.0
      %vm409 = vcmp.ge.f32.partialorder %v345, 0.0
      %vm410 = vcmp.ge.f32.partialorder %v346, 0.0
      %vm411 = vcmp.ge.f32.partialorder %v347, 0.0
      %vm412 = vcmp.ge.f32.partialorder %v348, 0.0
      %vm413 = vcmp.ge.f32.partialorder %v349, 0.0
      %vm414 = vcmp.ge.f32.partialorder %v350, 0.0
      %vm415 = vcmp.ge.f32.partialorder %v351, 0.0
      %vm416 = vcmp.ge.f32.partialorder %v352, 0.0
      %vm417 = vcmp.ge.f32.partialorder %v353, 0.0
      %vm418 = vcmp.ge.f32.partialorder %v354, 0.0
      %vm419 = vcmp.ge.f32.partialorder %v355, 0.0
      %vm420 = vcmp.ge.f32.partialorder %v356, 0.0
      %vm421 = vcmp.ge.f32.partialorder %v357, 0.0
      %vm422 = vcmp.ge.f32.partialorder %v358, 0.0
      %vm423 = vcmp.ge.f32.partialorder %v359, 0.0
      %vm424 = vcmp.ge.f32.partialorder %v360, 0.0
      %vm425 = vcmp.ge.f32.partialorder %v361, 0.0
      %vm426 = vcmp.ge.f32.partialorder %v362, 0.0
      %vm427 = vcmp.ge.f32.partialorder %v363, 0.0
      %vm428 = vcmp.ge.f32.partialorder %v364, 0.0
      %vm429 = vcmp.ge.f32.partialorder %v365, 0.0
      %vm430 = vcmp.ge.f32.partialorder %v366, 0.0
      %vm431 = vcmp.ge.f32.partialorder %v367, 0.0
      %vm432 = vcmp.ge.f32.partialorder %v368, 0.0
      %vm433 = vcmp.ge.f32.partialorder %v369, 0.0
      %vm434 = vcmp.ge.f32.partialorder %v370, 0.0
      %vm435 = vcmp.ge.f32.partialorder %v371, 0.0
      %vm436 = vcmp.ge.f32.partialorder %v372, 0.0
      %vm437 = vcmp.ge.f32.partialorder %v373, 0.0
      %vm438 = vcmp.ge.f32.partialorder %v374, 0.0
      %vm439 = vcmp.ge.f32.partialorder %v375, 0.0
      %vm440 = vcmp.ge.f32.partialorder %v376, 0.0
      %vm441 = vcmp.ge.f32.partialorder %v377, 0.0
      %vm442 = vcmp.ge.f32.partialorder %v378, 0.0
      %vm443 = vcmp.ge.f32.partialorder %v379, 0.0
      %vm444 = vcmp.ge.f32.partialorder %v380, 0.0
      %vm445 = vcmp.ge.f32.partialorder %v381, 0.0
      %vm446 = vcmp.ge.f32.partialorder %v382, 0.0
      %v447 = vmul.f32 %v319, 0.2
      %v448 = vmul.f32 %v320, 0.2
      %v449 = vmul.f32 %v321, 0.2
      %v450 = vmul.f32 %v322, 0.2
      %v451 = vmul.f32 %v323, 0.2
      %v452 = vmul.f32 %v324, 0.2
      %v453 = vmul.f32 %v325, 0.2
      %v454 = vmul.f32 %v326, 0.2
      %v455 = vmul.f32 %v327, 0.2
      %v456 = vmul.f32 %v328, 0.2
      %v457 = vmul.f32 %v329, 0.2
      %v458 = vmul.f32 %v330, 0.2
      %v459 = vmul.f32 %v331, 0.2
      %v460 = vmul.f32 %v332, 0.2
      %v461 = vmul.f32 %v333, 0.2
      %v462 = vmul.f32 %v334, 0.2
      %v463 = vmul.f32 %v335, 0.2
      %v464 = vmul.f32 %v336, 0.2
      %v465 = vmul.f32 %v337, 0.2
      %v466 = vmul.f32 %v338, 0.2
      %v467 = vmul.f32 %v339, 0.2
      %v468 = vmul.f32 %v340, 0.2
      %v469 = vmul.f32 %v341, 0.2
      %v470 = vmul.f32 %v342, 0.2
      %v471 = vmul.f32 %v343, 0.2
      %v472 = vmul.f32 %v344, 0.2
      %v473 = vmul.f32 %v345, 0.2
      %v474 = vmul.f32 %v346, 0.2
      %v475 = vmul.f32 %v347, 0.2
      %v476 = vmul.f32 %v348, 0.2
      %v477 = vmul.f32 %v349, 0.2
      %v478 = vmul.f32 %v350, 0.2
      %v479 = vmul.f32 %v351, 0.2
      %v480 = vmul.f32 %v352, 0.2
      %v481 = vmul.f32 %v353, 0.2
      %v482 = vmul.f32 %v354, 0.2
      %v483 = vmul.f32 %v355, 0.2
      %v484 = vmul.f32 %v356, 0.2
      %v485 = vmul.f32 %v357, 0.2
      %v486 = vmul.f32 %v358, 0.2
      %v487 = vmul.f32 %v359, 0.2
      %v488 = vmul.f32 %v360, 0.2
      %v489 = vmul.f32 %v361, 0.2
      %v490 = vmul.f32 %v362, 0.2
      %v491 = vmul.f32 %v363, 0.2
      %v492 = vmul.f32 %v364, 0.2
      %v493 = vmul.f32 %v365, 0.2
      %v494 = vmul.f32 %v366, 0.2
      %v495 = vmul.f32 %v367, 0.2
      %v496 = vmul.f32 %v368, 0.2
      %v497 = vmul.f32 %v369, 0.2
      %v498 = vmul.f32 %v370, 0.2
      %v499 = vmul.f32 %v371, 0.2
      %v500 = vmul.f32 %v372, 0.2
      %v501 = vmul.f32 %v373, 0.2
      %v502 = vmul.f32 %v374, 0.2
      %v503 = vmul.f32 %v375, 0.2
      %v504 = vmul.f32 %v376, 0.2
      %v505 = vmul.f32 %v377, 0.2
      %v506 = vmul.f32 %v378, 0.2
      %v507 = vmul.f32 %v379, 0.2
      %v508 = vmul.f32 %v380, 0.2
      %v509 = vmul.f32 %v381, 0.2
      %v510 = vmul.f32 %v382, 0.2
      %v511 = vsel %vm383, %v319, %v447
      %v512 = vsel %vm384, %v320, %v448
      %v513 = vsel %vm385, %v321, %v449
      %v514 = vsel %vm386, %v322, %v450
      %v515 = vsel %vm387, %v323, %v451
      %v516 = vsel %vm388, %v324, %v452
      %v517 = vsel %vm389, %v325, %v453
      %v518 = vsel %vm390, %v326, %v454
      %v519 = vsel %vm391, %v327, %v455
      %v520 = vsel %vm392, %v328, %v456
      %v521 = vsel %vm393, %v329, %v457
      %v522 = vsel %vm394, %v330, %v458
      %v523 = vsel %vm395, %v331, %v459
      %v524 = vsel %vm396, %v332, %v460
      %v525 = vsel %vm397, %v333, %v461
      %v526 = vsel %vm398, %v334, %v462
      %v527 = vsel %vm399, %v335, %v463
      %v528 = vsel %vm400, %v336, %v464
      %v529 = vsel %vm401, %v337, %v465
      %v530 = vsel %vm402, %v338, %v466
      %v531 = vsel %vm403, %v339, %v467
      %v532 = vsel %vm404, %v340, %v468
      %v533 = vsel %vm405, %v341, %v469
      %v534 = vsel %vm406, %v342, %v470
      %v535 = vsel %vm407, %v343, %v471
      %v536 = vsel %vm408, %v344, %v472
      %v537 = vsel %vm409, %v345, %v473
      %v538 = vsel %vm410, %v346, %v474
      %v539 = vsel %vm411, %v347, %v475
      %v540 = vsel %vm412, %v348, %v476
      %v541 = vsel %vm413, %v349, %v477
      %v542 = vsel %vm414, %v350, %v478
      %v543 = vsel %vm415, %v351, %v479
      %v544 = vsel %vm416, %v352, %v480
      %v545 = vsel %vm417, %v353, %v481
      %v546 = vsel %vm418, %v354, %v482
      %v547 = vsel %vm419, %v355, %v483
      %v548 = vsel %vm420, %v356, %v484
      %v549 = vsel %vm421, %v357, %v485
      %v550 = vsel %vm422, %v358, %v486
      %v551 = vsel %vm423, %v359, %v487
      %v552 = vsel %vm424, %v360, %v488
      %v553 = vsel %vm425, %v361, %v489
      %v554 = vsel %vm426, %v362, %v490
      %v555 = vsel %vm427, %v363, %v491
      %v556 = vsel %vm428, %v364, %v492
      %v557 = vsel %vm429, %v365, %v493
      %v558 = vsel %vm430, %v366, %v494
      %v559 = vsel %vm431, %v367, %v495
      %v560 = vsel %vm432, %v368, %v496
      %v561 = vsel %vm433, %v369, %v497
      %v562 = vsel %vm434, %v370, %v498
      %v563 = vsel %vm435, %v371, %v499
      %v564 = vsel %vm436, %v372, %v500
      %v565 = vsel %vm437, %v373, %v501
      %v566 = vsel %vm438, %v374, %v502
      %v567 = vsel %vm439, %v375, %v503
      %v568 = vsel %vm440, %v376, %v504
      %v569 = vsel %vm441, %v377, %v505
      %v570 = vsel %vm442, %v378, %v506
      %v571 = vsel %vm443, %v379, %v507
      %v572 = vsel %vm444, %v380, %v508
      %v573 = vsel %vm445, %v381, %v509
      %v574 = vsel %vm446, %v382, %v510
      %575 = vst [vmem:[%s177] sm:$0xff] %v511
      %576 = vst [vmem:[%s177 + $0x8] sm:$0xff] %v512
      %577 = vst [vmem:[%s177 + $0x10] sm:$0xff] %v513
      %578 = vst [vmem:[%s177 + $0x18] sm:$0xff] %v514
      %579 = vst [vmem:[%s177 + $0x20] sm:$0xff] %v515
      %580 = vst [vmem:[%s177 + $0x28] sm:$0xff] %v516
      %581 = vst [vmem:[%s177 + $0x30] sm:$0xff] %v517
      %582 = vst [vmem:[%s177 + $0x38] sm:$0xff] %v518
      %583 = vst [vmem:[%s177 + $0x40] sm:$0xff] %v519
      %584 = vst [vmem:[%s177 + $0x48] sm:$0xff] %v520
      %585 = vst [vmem:[%s177 + $0x50] sm:$0xff] %v521
      %586 = vst [vmem:[%s177 + $0x58] sm:$0xff] %v522
      %587 = vst [vmem:[%s177 + $0x60] sm:$0xff] %v523
      %588 = vst [vmem:[%s177 + $0x68] sm:$0xff] %v524
      %589 = vst [vmem:[%s177 + $0x70] sm:$0xff] %v525
      %590 = vst [vmem:[%s177 + $0x78] sm:$0xff] %v526
      %591 = vst [vmem:[%s177 + $0x80] sm:$0xff] %v527
      %592 = vst [vmem:[%s177 + $0x88] sm:$0xff] %v528
      %593 = vst [vmem:[%s177 + $0x90] sm:$0xff] %v529
      %594 = vst [vmem:[%s177 + $0x98] sm:$0xff] %v530
      %595 = vst [vmem:[%s177 + $0xa0] sm:$0xff] %v531
      %596 = vst [vmem:[%s177 + $0xa8] sm:$0xff] %v532
      %597 = vst [vmem:[%s177 + $0xb0] sm:$0xff] %v533
      %598 = vst [vmem:[%s177 + $0xb8] sm:$0xff] %v534
      %599 = vst [vmem:[%s177 + $0xc0] sm:$0xff] %v535
      %600 = vst [vmem:[%s177 + $0xc8] sm:$0xff] %v536
      %601 = vst [vmem:[%s177 + $0xd0] sm:$0xff] %v537
      %602 = vst [vmem:[%s177 + $0xd8] sm:$0xff] %v538
      %603 = vst [vmem:[%s177 + $0xe0] sm:$0xff] %v539
      %604 = vst [vmem:[%s177 + $0xe8] sm:$0xff] %v540
      %605 = vst [vmem:[%s177 + $0xf0] sm:$0xff] %v541
      %606 = vst [vmem:[%s177 + $0xf8] sm:$0xff] %v542
      %607 = vst [vmem:[%s177 + $0x100] sm:$0xff] %v543
      %608 = vst [vmem:[%s177 + $0x108] sm:$0xff] %v544
      %609 = vst [vmem:[%s177 + $0x110] sm:$0xff] %v545
      %610 = vst [vmem:[%s177 + $0x118] sm:$0xff] %v546
      %611 = vst [vmem:[%s177 + $0x120] sm:$0xff] %v547
      %612 = vst [vmem:[%s177 + $0x128] sm:$0xff] %v548
      %613 = vst [vmem:[%s177 + $0x130] sm:$0xff] %v549
      %614 = vst [vmem:[%s177 + $0x138] sm:$0xff] %v550
      %615 = vst [vmem:[%s177 + $0x140] sm:$0xff] %v551
      %616 = vst [vmem:[%s177 + $0x148] sm:$0xff] %v552
      %617 = vst [vmem:[%s177 + $0x150] sm:$0xff] %v553
      %618 = vst [vmem:[%s177 + $0x158] sm:$0xff] %v554
      %619 = vst [vmem:[%s177 + $0x160] sm:$0xff] %v555
      %620 = vst [vmem:[%s177 + $0x168] sm:$0xff] %v556
      %621 = vst [vmem:[%s177 + $0x170] sm:$0xff] %v557
      %622 = vst [vmem:[%s177 + $0x178] sm:$0xff] %v558
      %623 = vst [vmem:[%s177 + $0x180] sm:$0xff] %v559
      %624 = vst [vmem:[%s177 + $0x188] sm:$0xff] %v560
      %625 = vst [vmem:[%s177 + $0x190] sm:$0xff] %v561
      %626 = vst [vmem:[%s177 + $0x198] sm:$0xff] %v562
      %627 = vst [vmem:[%s177 + $0x1a0] sm:$0xff] %v563
      %628 = vst [vmem:[%s177 + $0x1a8] sm:$0xff] %v564
      %629 = vst [vmem:[%s177 + $0x1b0] sm:$0xff] %v565
      %630 = vst [vmem:[%s177 + $0x1b8] sm:$0xff] %v566
      %631 = vst [vmem:[%s177 + $0x1c0] sm:$0xff] %v567
      %632 = vst [vmem:[%s177 + $0x1c8] sm:$0xff] %v568
      %633 = vst [vmem:[%s177 + $0x1d0] sm:$0xff] %v569
      %634 = vst [vmem:[%s177 + $0x1d8] sm:$0xff] %v570
      %635 = vst [vmem:[%s177 + $0x1e0] sm:$0xff] %v571
      %636 = vst [vmem:[%s177 + $0x1e8] sm:$0xff] %v572
      %637 = vst [vmem:[%s177 + $0x1f0] sm:$0xff] %v573
      %638 = vst [vmem:[%s177 + $0x1f8] sm:$0xff] %v574
      %s639 = smul.u32 32, %s14
      %p640 = scmp.lt.s32.totalorder %s639, 63
      %s641 = scalar_select %p640, %s639, 63
      %s642 = smul.addr %s641, 2
      %s643 = smul.addr %s642, 8
      %s644 = scalar_lea.vmem %s3, %s643
      // Predicated region
      $region33: #{upconv_forward.3} parent=31 // pred_check
        %p645 = pneg %p100
      $region34: #{upconv_forward.3} parent=31 // pred_check_branch
        %647 = sbr.rel (%p645) target = $region36
      $region35: #{upconv_forward.3} parent=31 // pred_region
        %s648 = smul.u32 32, %s14
      $region36: #{upconv_forward.3} parent=31 // pred_fallthru
        _
    $region32: #{upconv_forward.3} parent=5 // pred_fallthru
      _
    %p649 = scmp.le.s32.totalorder 2, %s9
    // Predicated region
    $region37: #{upconv_forward.3} parent=5 // pred_check
      %p650 = pneg %p649
    $region38: #{upconv_forward.3} parent=5 // pred_check_branch
      %652 = sbr.rel (%p650) target = $region40
    $region39: #{upconv_forward.3} parent=5 // pred_region
      %s653 = ssub.s32 %s9, 2
      // Predicated region
      $region41: #{upconv_forward.3} parent=39 // pred_check
        %p654 = pneg %p106
      $region42: #{upconv_forward.3} parent=39 // pred_check_branch
        %656 = sbr.rel (%p654) target = $region44
      $region43: #{upconv_forward.3} parent=39 // pred_region
        %s657 = smul.u32 32, %s15
        %p658 = scmp.lt.s32.totalorder %s657, 63
        %s659 = scalar_select %p658, %s657, 63
        %s660 = smul.addr %s659, 2
        %s661 = smul.addr %s660, 8
        %s662 = scalar_lea.vmem %s3, %s661
      $region44: #{upconv_forward.3} parent=39 // pred_fallthru
        _
    $region40: #{upconv_forward.3} parent=5 // pred_fallthru
      _
  $region6: #{upconv_forward.3} parent=0 // loop_footer
    %s13 = sadd.s32 1, %s9
  $region7: #{upconv_forward.3} parent=0 // loop_footer_branch
    %8 = sbr.rel target = $region3
  $region8: #{upconv_forward.3} parent=0 // loop_exit
    _

// kernel: upconv_forward.2
$region0: #{upconv_forward.2}
  #allocation0 [shape = 'u32[]', space=smem, size = 0x4, offset = 0x4, fixed_abs, tag = 'smem constant byte address 0x4 - core index']
  #allocation1 [shape = 'u32[72,128]{1,0:T(1,128)}', space=vmem, size = 0x9000, scoped, tag = 'internal scratch']
  %s0 = inlined_call_operand.vmem [shape: f32[512,288], index: 0, kind: input, shape index: {}]
  %s1 = inlined_call_operand.vmem [shape: f32[288,256], index: 1, kind: input, shape index: {}]
  %s2 = inlined_call_operand.vmem [shape: f32[512,256], index: 2, kind: output, shape index: {0}]
  %s3 = inlined_call_operand.vmem [shape: f32[2,2,256], index: 3, kind: output, shape index: {1}]
  %4 = xla_tuple %s2, %s3
  %s5 = sld [smem:[#allocation0]]
  $region49: #{upconv_forward.2} parent=0
    _
  %s7 = ssub.s32 1, %s5
  %s8 = scalar_select 0, %s7, %s5
  loop: start=0, step=1, limit=4
  $region2: #{upconv_forward.2} parent=0 // loop_pre_header
    _
  $region3: #{upconv_forward.2} parent=0 // loop_header
    %s10 = sphi 0, %s14
    %p11 = scmp.ge.s32.totalorder %s10, 4
    %s20 = sphi 0, %s22
    %s23 = sphi 0, %s20
    %s24 = sphi 0, %s23
    %s40 = sphi 0, %s24
    %s44 = sphi 0, %s44
    %s46 = sphi 0, %s44
    %s47 = sphi 0, %s46
    %s61 = sphi 0, %s47
    %s67 = sphi 0, %s69
    %s70 = sphi 0, %s67
    %s71 = sphi 0, %s70
    %s87 = sphi 0, %s71
    %s93 = sphi 0, %s95
    %s96 = sphi 0, %s93
    %s97 = sphi 0, %s96
    %s113 = sphi 0, %s97
  $region4: #{upconv_forward.2} parent=0 // loop_header_branch
    %13 = sbr.rel (%p11) target = $region8
  $region5: #{upconv_forward.2} parent=0 // loop_body
    %s15 = ssub.s32 %s10, 1
    %s16 = ssub.s32 %s10, 2
    %s17 = sadd.s32 %s10, 1
    %s18 = ssub.s32 %s10, %s17
    %p19 = scmp.eq.s32.totalorder %s18, 0
    %s21 = sadd.s32 %s20, 1
    %s22 = scalar_select %p19, %s20, %s21
    %p25 = pneg %p19
    %p26 = scmp.eq.s32.totalorder %s10, 1
    %p27 = por %p25, %p26
    %p28 = scmp.ne.s32.totalorder %s20, %s23
    %p29 = scmp.eq.s32.totalorder %s10, 0
    %p30 = por %p28, %p29
    %p31 = scmp.ne.s32.totalorder %s20, %s23
    %p32 = scmp.eq.s32.totalorder %s15, 1
    %p33 = por %p31, %p32
    %p34 = scmp.ne.s32.totalorder %s23, %s24
    %p35 = scmp.eq.s32.totalorder %s15, 0
    %p36 = por %p34, %p35
    %p37 = scmp.ne.s32.totalorder %s23, %s24
    %p38 = scmp.eq.s32.totalorder %s16, 1
    %p39 = por %p37, %p38
    %p41 = scmp.ne.s32.totalorder %s24, %s40
    %p42 = scmp.eq.s32.totalorder %s16, 0
    %p43 = por %p41, %p42
    %s45 = sadd.s32 %s44, 1
    %p48 = scmp.eq.s32.totalorder %s10, 1
    %p49 = scmp.ne.s32.totalorder %s44, %s46
    %p50 = scmp.eq.s32.totalorder %s10, 0
    %p51 = por %p49, %p50
    %p52 = scmp.ne.s32.totalorder %s44, %s46
    %p53 = scmp.eq.s32.totalorder %s15, 1
    %p54 = por %p52, %p53
    %p55 = scmp.ne.s32.totalorder %s46, %s47
    %p56 = scmp.eq.s32.totalorder %s15, 0
    %p57 = por %p55, %p56
    %p58 = scmp.ne.s32.totalorder %s46, %s47
    %p59 = scmp.eq.s32.totalorder %s16, 1
    %p60 = por %p58, %p59
    %p62 = scmp.ne.s32.totalorder %s47, %s61
    %p63 = scmp.eq.s32.totalorder %s16, 0
    %p64 = por %p62, %p63
    %s65 = ssub.s32 %s10, %s17
    %p66 = scmp.eq.s32.totalorder %s65, 0
    %s68 = sadd.s32 %s67, 1
    %s69 = scalar_select %p66, %s67, %s68
    %p72 = pneg %p66
    %p73 = scmp.eq.s32.totalorder %s10, 1
    %p74 = por %p72, %p73
    %p75 = scmp.ne.s32.totalorder %s67, %s70
    %p76 = scmp.eq.s32.totalorder %s10, 0
    %p77 = por %p75, %p76
    %p78 = scmp.ne.s32.totalorder %s67, %s70
    %p79 = scmp.eq.s32.totalorder %s15, 1
    %p80 = por %p78, %p79
    %p81 = scmp.ne.s32.totalorder %s70, %s71
    %p82 = scmp.eq.s32.totalorder %s15, 0
    %p83 = por %p81, %p82
    %p84 = scmp.ne.s32.totalorder %s70, %s71
    %p85 = scmp.eq.s32.totalorder %s16, 1
    %p86 = por %p84, %p85
    %p88 = scmp.ne.s32.totalorder %s71, %s87
    %p89 = scmp.eq.s32.totalorder %s16, 0
    %p90 = por %p88, %p89
    %s91 = ssub.s32 %s10, %s17
    %p92 = scmp.eq.s32.totalorder %s91, 0
    %s94 = sadd.s32 %s93, 1
    %s95 = scalar_select %p92, %s93, %s94
    %p98 = pneg %p92
    %p99 = scmp.eq.s32.totalorder %s10, 1
    %p100 = por %p98, %p99
    %p101 = scmp.ne.s32.totalorder %s93, %s96
    %p102 = scmp.eq.s32.totalorder %s10, 0
    %p103 = por %p101, %p102
    %p104 = scmp.ne.s32.totalorder %s93, %s96
    %p105 = scmp.eq.s32.totalorder %s15, 1
    %p106 = por %p104, %p105
    %p107 = scmp.ne.s32.totalorder %s96, %s97
    %p108 = scmp.eq.s32.totalorder %s15, 0
    %p109 = por %p107, %p108
    %p110 = scmp.ne.s32.totalorder %s96, %s97
    %p111 = scmp.eq.s32.totalorder %s16, 1
    %p112 = por %p110, %p111
    %p114 = scmp.ne.s32.totalorder %s97, %s113
    %p115 = scmp.eq.s32.totalorder %s16, 0
    %p116 = por %p114, %p115
    %p117 = scmp.le.s32.totalorder 1, %s10
    %p118 = scmp.lt.s32.totalorder %s10, 3
    %p119 = pnand %p117, %p118
    %p120 = pneg %p119
    // Predicated region
    $region9: #{upconv_forward.2} parent=5 // pred_check
      _
    $region10: #{upconv_forward.2} parent=5 // pred_check_branch
      %122 = sbr.rel (%p119) target = $region12
    $region11: #{upconv_forward.2} parent=5 // pred_region
      %s123 = ssub.s32 %s10, 1
      // Predicated region
      $region13: #{upconv_forward.2} parent=11 // pred_check
        %p124 = pneg %p57
      $region14: #{upconv_forward.2} parent=11 // pred_check_branch
        %126 = sbr.rel (%p124) target = $region16
      $region15: #{upconv_forward.2} parent=11 // pred_region
        _
      $region16: #{upconv_forward.2} parent=11 // pred_fallthru
        _
    $region12: #{upconv_forward.2} parent=5 // pred_fallthru
      _
    %p127 = scmp.lt.s32.totalorder %s10, 2
    // Predicated region
    $region17: #{upconv_forward.2} parent=5 // pred_check
      %p128 = pneg %p127
    $region18: #{upconv_forward.2} parent=5 // pred_check_branch
      %130 = sbr.rel (%p128) target = $region20
    $region19: #{upconv_forward.2} parent=5 // pred_region
      // Predicated region
      $region21: #{upconv_forward.2} parent=19 // pred_check
        %p131 = pneg %p30
      $region22: #{upconv_forward.2} parent=19 // pred_check_branch
        %133 = sbr.rel (%p131) target = $region24
      $region23: #{upconv_forward.2} parent=19 // pred_region
        %s134 = smul.u32 32, %s10
        %p135 = scmp.lt.s32.totalorder %s134, 63
        %s136 = scalar_select %p135, %s134, 63
        %s137 = smul.addr %s136, 3
        %s138 = smul.addr %s137, 8
        %s139 = scalar_lea.vmem %s0, %s138
        %s140 = smul.u32 32, %s10
      $region24: #{upconv_forward.2} parent=19 // pred_fallthru
        _
    $region20: #{upconv_forward.2} parent=5 // pred_fallthru
      _
    %p141 = scmp.le.s32.totalorder 1, %s10
    %p142 = scmp.lt.s32.totalorder %s10, 3
    %p143 = pnand %p141, %p142
    %p144 = pneg %p143
    // Predicated region
    $region25: #{upconv_forward.2} parent=5 // pred_check
      _
    $region26: #{upconv_forward.2} parent=5 // pred_check_branch
      %146 = sbr.rel (%p143) target = $region28
    $region27: #{upconv_forward.2} parent=5 // pred_region
      %s147 = ssub.s32 %s10, 1
      %s148 = smul.u32 32, %s15
      %p149 = scmp.lt.s32.totalorder %s148, 63
      %s150 = scalar_select %p149, %s148, 63
      %s151 = smul.addr %s150, 3
      %s152 = smul.addr %s151, 8
      %s153 = scalar_lea.vmem %s0, %s152
      %p154 = pneg %p36
      %p155 = pneg %p33
      %p156 = pneg %p57
      %p157 = pneg %p54
      %p158 = pneg %p83
      %p159 = pneg %p80
      %s160 = smul.u32 32, %s15
      %p161 = scmp.lt.s32.totalorder %s160, 63
      %s162 = scalar_select %p161, %s160, 63
      %s163 = smul.addr %s162, 2
      %s164 = smul.addr %s163, 8
      %s165 = scalar_lea.vmem %s2, %s164
      %p166 = pneg %p109
      %p167 = pneg %p106
      %p168 = scmp.lt.s32.totalorder %s15, 1
      %s169 = scalar_select %p168, %s15, 1
      %s170 = smul.addr %s169, 2
      %s171 = smul.addr %s170, 2
      %s172 = scalar_lea.vmem %s3, %s171
      %s173 = smul.u32 32, %s15
      %p174 = scmp.lt.s32.totalorder %s173, 63
      %s175 = scalar_select %p174, %s173, 63
      %s176 = smul.addr %s175, 3
      %s177 = smul.addr %s176, 8
      %s178 = scalar_lea.vmem %s0, %s177
      %s179 = smul.u32 32, %s15
      %s180 = smul.u32 32, %s15
      %p181 = scmp.lt.s32.totalorder %s180, 63
      %s182 = scalar_select %p181, %s180, 63
      %s183 = smul.addr %s182, 2
      %s184 = smul.addr %s183, 8
      %s185 = scalar_lea.vmem %s2, %s184
      %s186 = smul.u32 32, %s15
      %p187 = scmp.lt.s32.totalorder %s15, 1
      %s188 = scalar_select %p187, %s15, 1
      %s189 = smul.addr %s188, 2
      %s190 = smul.addr %s189, 2
      %s191 = scalar_lea.vmem %s3, %s190
      %v192 = vld [vmem:[%s178] sm:$0xff]
      %v193 = vld [vmem:[%s178 + $0x8] sm:$0xff]
      %v194 = vld [vmem:[%s178 + $0x10] sm:$0xff]
      %v195 = vld [vmem:[%s178 + $0x18] sm:$0xff]
      %v196 = vld [vmem:[%s178 + $0x20] sm:$0xff]
      %v197 = vld [vmem:[%s178 + $0x28] sm:$0xff]
      %v198 = vld [vmem:[%s178 + $0x30] sm:$0xff]
      %v199 = vld [vmem:[%s178 + $0x38] sm:$0xff]
      %v200 = vld [vmem:[%s178 + $0x40] sm:$0xff]
      %v201 = vld [vmem:[%s178 + $0x48] sm:$0xff]
      %v202 = vld [vmem:[%s178 + $0x50] sm:$0xff]
      %v203 = vld [vmem:[%s178 + $0x58] sm:$0xff]
      %v204 = vld [vmem:[%s178 + $0x60] sm:$0xff]
      %v205 = vld [vmem:[%s178 + $0x68] sm:$0xff]
      %v206 = vld [vmem:[%s178 + $0x70] sm:$0xff]
      %v207 = vld [vmem:[%s178 + $0x78] sm:$0xff]
      %v208 = vld [vmem:[%s178 + $0x80] sm:$0xff]
      %v209 = vld [vmem:[%s178 + $0x88] sm:$0xff]
      %v210 = vld [vmem:[%s178 + $0x90] sm:$0xff]
      %v211 = vld [vmem:[%s178 + $0x98] sm:$0xff]
      %v212 = vld [vmem:[%s178 + $0xa0] sm:$0xff]
      %v213 = vld [vmem:[%s178 + $0xa8] sm:$0xff]
      %v214 = vld [vmem:[%s178 + $0xb0] sm:$0xff]
      %v215 = vld [vmem:[%s178 + $0xb8] sm:$0xff]
      %v216 = vld [vmem:[%s178 + $0xc0] sm:$0xff]
      %v217 = vld [vmem:[%s178 + $0xc8] sm:$0xff]
      %v218 = vld [vmem:[%s178 + $0xd0] sm:$0xff]
      %v219 = vld [vmem:[%s178 + $0xd8] sm:$0xff]
      %v220 = vld [vmem:[%s178 + $0xe0] sm:$0xff]
      %v221 = vld [vmem:[%s178 + $0xe8] sm:$0xff]
      %v222 = vld [vmem:[%s178 + $0xf0] sm:$0xff]
      %v223 = vld [vmem:[%s178 + $0xf8] sm:$0xff]
      %v224 = vld [vmem:[%s178 + $0x100] sm:$0xff]
      %v225 = vld [vmem:[%s178 + $0x108] sm:$0xff]
      %v226 = vld [vmem:[%s178 + $0x110] sm:$0xff]
      %v227 = vld [vmem:[%s178 + $0x118] sm:$0xff]
      %v228 = vld [vmem:[%s178 + $0x120] sm:$0xff]
      %v229 = vld [vmem:[%s178 + $0x128] sm:$0xff]
      %v230 = vld [vmem:[%s178 + $0x130] sm:$0xff]
      %v231 = vld [vmem:[%s178 + $0x138] sm:$0xff]
      %v232 = vld [vmem:[%s178 + $0x140] sm:$0xff]
      %v233 = vld [vmem:[%s178 + $0x148] sm:$0xff]
      %v234 = vld [vmem:[%s178 + $0x150] sm:$0xff]
      %v235 = vld [vmem:[%s178 + $0x158] sm:$0xff]
      %v236 = vld [vmem:[%s178 + $0x160] sm:$0xff]
      %v237 = vld [vmem:[%s178 + $0x168] sm:$0xff]
      %v238 = vld [vmem:[%s178 + $0x170] sm:$0xff]
      %v239 = vld [vmem:[%s178 + $0x178] sm:$0xff]
      %v240 = vld [vmem:[%s178 + $0x180] sm:$0xff]
      %v241 = vld [vmem:[%s178 + $0x188] sm:$0xff]
      %v242 = vld [vmem:[%s178 + $0x190] sm:$0xff]
      %v243 = vld [vmem:[%s178 + $0x198] sm:$0xff]
      %v244 = vld [vmem:[%s178 + $0x1a0] sm:$0xff]
      %v245 = vld [vmem:[%s178 + $0x1a8] sm:$0xff]
      %v246 = vld [vmem:[%s178 + $0x1b0] sm:$0xff]
      %v247 = vld [vmem:[%s178 + $0x1b8] sm:$0xff]
      %v248 = vld [vmem:[%s178 + $0x1c0] sm:$0xff]
      %v249 = vld [vmem:[%s178 + $0x1c8] sm:$0xff]
      %v250 = vld [vmem:[%s178 + $0x1d0] sm:$0xff]
      %v251 = vld [vmem:[%s178 + $0x1d8] sm:$0xff]
      %v252 = vld [vmem:[%s178 + $0x1e0] sm:$0xff]
      %v253 = vld [vmem:[%s178 + $0x1e8] sm:$0xff]
      %v254 = vld [vmem:[%s178 + $0x1f0] sm:$0xff]
      %v255 = vld [vmem:[%s178 + $0x1f8] sm:$0xff]
      %v256 = vld [vmem:[%s178 + $0x200] sm:$0xff]
      %v257 = vld [vmem:[%s178 + $0x208] sm:$0xff]
      %v258 = vld [vmem:[%s178 + $0x210] sm:$0xff]
      %v259 = vld [vmem:[%s178 + $0x218] sm:$0xff]
      %v260 = vld [vmem:[%s178 + $0x220] sm:$0xff]
      %v261 = vld [vmem:[%s178 + $0x228] sm:$0xff]
      %v262 = vld [vmem:[%s178 + $0x230] sm:$0xff]
      %v263 = vld [vmem:[%s178 + $0x238] sm:$0xff]
      %v264 = vld [vmem:[%s178 + $0x240] sm:$0xff]
      %v265 = vld [vmem:[%s178 + $0x248] sm:$0xff]
      %v266 = vld [vmem:[%s178 + $0x250] sm:$0xff]
      %v267 = vld [vmem:[%s178 + $0x258] sm:$0xff]
      %v268 = vld [vmem:[%s178 + $0x260] sm:$0xff]
      %v269 = vld [vmem:[%s178 + $0x268] sm:$0xff]
      %v270 = vld [vmem:[%s178 + $0x270] sm:$0xff]
      %v271 = vld [vmem:[%s178 + $0x278] sm:$0xff]
      %v272 = vld [vmem:[%s178 + $0x280] sm:$0xff]
      %v273 = vld [vmem:[%s178 + $0x288] sm:$0xff]
      %v274 = vld [vmem:[%s178 + $0x290] sm:$0xff]
      %v275 = vld [vmem:[%s178 + $0x298] sm:$0xff]
      %v276 = vld [vmem:[%s178 + $0x2a0] sm:$0xff]
      %v277 = vld [vmem:[%s178 + $0x2a8] sm:$0xff]
      %v278 = vld [vmem:[%s178 + $0x2b0] sm:$0xff]
      %v279 = vld [vmem:[%s178 + $0x2b8] sm:$0xff]
      %v280 = vld [vmem:[%s178 + $0x2c0] sm:$0xff]
      %v281 = vld [vmem:[%s178 + $0x2c8] sm:$0xff]
      %v282 = vld [vmem:[%s178 + $0x2d0] sm:$0xff]
      %v283 = vld [vmem:[%s178 + $0x2d8] sm:$0xff]
      %v284 = vld [vmem:[%s178 + $0x2e0] sm:$0xff]
      %v285 = vld [vmem:[%s178 + $0x2e8] sm:$0xff]
      %v286 = vld [vmem:[%s178 + $0x2f0] sm:$0xff]
      %v287 = vld [vmem:[%s178 + $0x2f8] sm:$0xff]
      %v288 = vld [vmem:[%s1] sm:$0xff]
      %v289 = vld [vmem:[%s1 + $0x8] sm:$0xff]
      %v290 = vld [vmem:[%s1 + $0x10] sm:$0xff]
      %v291 = vld [vmem:[%s1 + $0x18] sm:$0xff]
      %v292 = vld [vmem:[%s1 + $0x20] sm:$0xff]
      %v293 = vld [vmem:[%s1 + $0x28] sm:$0xff]
      %v294 = vld [vmem:[%s1 + $0x30] sm:$0xff]
      %v295 = vld [vmem:[%s1 + $0x38] sm:$0xff]
      %v296 = vld [vmem:[%s1 + $0x40] sm:$0xff]
      %v297 = vld [vmem:[%s1 + $0x48] sm:$0xff]
      %v298 = vld [vmem:[%s1 + $0x50] sm:$0xff]
      %v299 = vld [vmem:[%s1 + $0x58] sm:$0xff]
      %v300 = vld [vmem:[%s1 + $0x60] sm:$0xff]
      %v301 = vld [vmem:[%s1 + $0x68] sm:$0xff]
      %v302 = vld [vmem:[%s1 + $0x70] sm:$0xff]
      %v303 = vld [vmem:[%s1 + $0x78] sm:$0xff]
      %v304 = vld [vmem:[%s1 + $0x80] sm:$0xff]
      %v305 = vld [vmem:[%s1 + $0x88] sm:$0xff]
      %v306 = vld [vmem:[%s1 + $0x90] sm:$0xff]
      %v307 = vld [vmem:[%s1 + $0x98] sm:$0xff]
      %v308 = vld [vmem:[%s1 + $0xa0] sm:$0xff]
      %v309 = vld [vmem:[%s1 + $0xa8] sm:$0xff]
      %v310 = vld [vmem:[%s1 + $0xb0] sm:$0xff]
      %v311 = vld [vmem:[%s1 + $0xb8] sm:$0xff]
      %v312 = vld [vmem:[%s1 + $0xc0] sm:$0xff]
      %v313 = vld [vmem:[%s1 + $0xc8] sm:$0xff]
      %v314 = vld [vmem:[%s1 + $0xd0] sm:$0xff]
      %v315 = vld [vmem:[%s1 + $0xd8] sm:$0xff]
      %v316 = vld [vmem:[%s1 + $0xe0] sm:$0xff]
      %v317 = vld [vmem:[%s1 + $0xe8] sm:$0xff]
      %v318 = vld [vmem:[%s1 + $0xf0] sm:$0xff]
      %v319 = vld [vmem:[%s1 + $0xf8] sm:$0xff]
      %v320 = vld [vmem:[%s1 + $0x100] sm:$0xff]
      %v321 = vld [vmem:[%s1 + $0x108] sm:$0xff]
      %v322 = vld [vmem:[%s1 + $0x110] sm:$0xff]
      %v323 = vld [vmem:[%s1 + $0x118] sm:$0xff]
      %v324 = vld [vmem:[%s1 + $0x120] sm:$0xff]
      %v325 = vld [vmem:[%s1 + $0x128] sm:$0xff]
      %v326 = vld [vmem:[%s1 + $0x130] sm:$0xff]
      %v327 = vld [vmem:[%s1 + $0x138] sm:$0xff]
      %v328 = vld [vmem:[%s1 + $0x140] sm:$0xff]
      %v329 = vld [vmem:[%s1 + $0x148] sm:$0xff]
      %v330 = vld [vmem:[%s1 + $0x150] sm:$0xff]
      %v331 = vld [vmem:[%s1 + $0x158] sm:$0xff]
      %v332 = vld [vmem:[%s1 + $0x160] sm:$0xff]
      %v333 = vld [vmem:[%s1 + $0x168] sm:$0xff]
      %v334 = vld [vmem:[%s1 + $0x170] sm:$0xff]
      %v335 = vld [vmem:[%s1 + $0x178] sm:$0xff]
      %v336 = vld [vmem:[%s1 + $0x180] sm:$0xff]
      %v337 = vld [vmem:[%s1 + $0x188] sm:$0xff]
      %v338 = vld [vmem:[%s1 + $0x190] sm:$0xff]
      %v339 = vld [vmem:[%s1 + $0x198] sm:$0xff]
      %v340 = vld [vmem:[%s1 + $0x1a0] sm:$0xff]
      %v341 = vld [vmem:[%s1 + $0x1a8] sm:$0xff]
      %v342 = vld [vmem:[%s1 + $0x1b0] sm:$0xff]
      %v343 = vld [vmem:[%s1 + $0x1b8] sm:$0xff]
      %v344 = vld [vmem:[%s1 + $0x1c0] sm:$0xff]
      %v345 = vld [vmem:[%s1 + $0x1c8] sm:$0xff]
      %v346 = vld [vmem:[%s1 + $0x1d0] sm:$0xff]
      %v347 = vld [vmem:[%s1 + $0x1d8] sm:$0xff]
      %v348 = vld [vmem:[%s1 + $0x1e0] sm:$0xff]
      %v349 = vld [vmem:[%s1 + $0x1e8] sm:$0xff]
      %v350 = vld [vmem:[%s1 + $0x1f0] sm:$0xff]
      %v351 = vld [vmem:[%s1 + $0x1f8] sm:$0xff]
      %v352 = vld [vmem:[%s1 + $0x200] sm:$0xff]
      %v353 = vld [vmem:[%s1 + $0x208] sm:$0xff]
      %v354 = vld [vmem:[%s1 + $0x210] sm:$0xff]
      %v355 = vld [vmem:[%s1 + $0x218] sm:$0xff]
      %v356 = vld [vmem:[%s1 + $0x220] sm:$0xff]
      %v357 = vld [vmem:[%s1 + $0x228] sm:$0xff]
      %v358 = vld [vmem:[%s1 + $0x230] sm:$0xff]
      %v359 = vld [vmem:[%s1 + $0x238] sm:$0xff]
      %vm360 = vcmask 261120
      %v362 = vsel %vm360, %v194, 0
      %v365 = vsel %vm360, %v197, 0
      %v368 = vsel %vm360, %v200, 0
      %v371 = vsel %vm360, %v203, 0
      %v374 = vsel %vm360, %v206, 0
      %v377 = vsel %vm360, %v209, 0
      %v380 = vsel %vm360, %v212, 0
      %v383 = vsel %vm360, %v215, 0
      %v386 = vsel %vm360, %v218, 0
      %v389 = vsel %vm360, %v221, 0
      %v392 = vsel %vm360, %v224, 0
      %v395 = vsel %vm360, %v227, 0
      %v398 = vsel %vm360, %v230, 0
      %v401 = vsel %vm360, %v233, 0
      %v404 = vsel %vm360, %v236, 0
      %v407 = vsel %vm360, %v239, 0
      %v410 = vsel %vm360, %v242, 0
      %v413 = vsel %vm360, %v245, 0
      %v416 = vsel %vm360, %v248, 0
      %v419 = vsel %vm360, %v251, 0
      %v422 = vsel %vm360, %v254, 0
      %v425 = vsel %vm360, %v257, 0
      %v428 = vsel %vm360, %v260, 0
      %v431 = vsel %vm360, %v263, 0
      %v434 = vsel %vm360, %v266, 0
      %v437 = vsel %vm360, %v269, 0
      %v440 = vsel %vm360, %v272, 0
      %v443 = vsel %vm360, %v275, 0
      %v446 = vsel %vm360, %v278, 0
      %v449 = vsel %vm360, %v281, 0
      %v452 = vsel %vm360, %v284, 0
      %v455 = vsel %vm360, %v287, 0
      %457 = vmatpush.msra.mxu0 %v318
      %458 = vmatpush.msra.mxu0 %v316
      %459 = vmatpush.msra.mxu0 %v314
      %460 = vmatpush.msra.mxu0 %v312
      %461 = vmatpush.msra.mxu0 %v310
      %462 = vmatpush.msra.mxu0 %v308
      %463 = vmatpush.msra.mxu0 %v306
      %464 = vmatpush.msra.mxu0 %v304
      %465 = vmatpush.msra.mxu0 %v302
      %466 = vmatpush.msra.mxu0 %v300
      %467 = vmatpush.msra.mxu0 %v298
      %468 = vmatpush.msra.mxu0 %v296
      %469 = vmatpush.msra.mxu0 %v294
      %470 = vmatpush.msra.mxu0 %v292
      %471 = vmatpush.msra.mxu0 %v290
      %472 = vmatpush.msra.mxu0 %v288
      %473 = vmatmul.f32.gmra.mxu0 %v192
      %v474 = vpop.f32.mrf.mxu0
      %v475 = vadd.f32 0.0, %v474
      %476 = vmatmul.f32.gmra.mxu0 %v195
      %v477 = vpop.f32.mrf.mxu0
      %v478 = vadd.f32 0.0, %v477
      %479 = vmatmul.f32.gmra.mxu0 %v198
      %v480 = vpop.f32.mrf.mxu0
      %v481 = vadd.f32 0.0, %v480
      %482 = vmatmul.f32.gmra.mxu0 %v201
      %v483 = vpop.f32.mrf.mxu0
      %v484 = vadd.f32 0.0, %v483
      %485 = vmatmul.f32.gmra.mxu0 %v204
      %v486 = vpop.f32.mrf.mxu0
      %v487 = vadd.f32 0.0, %v486
      %488 = vmatmul.f32.gmra.mxu0 %v207
      %v489 = vpop.f32.mrf.mxu0
      %v490 = vadd.f32 0.0, %v489
      %491 = vmatmul.f32.gmra.mxu0 %v210
      %v492 = vpop.f32.mrf.mxu0
      %v493 = vadd.f32 0.0, %v492
      %494 = vmatmul.f32.gmra.mxu0 %v213
      %v495 = vpop.f32.mrf.mxu0
      %v496 = vadd.f32 0.0, %v495
      %497 = vmatmul.f32.gmra.mxu0 %v216
      %v498 = vpop.f32.mrf.mxu0
      %v499 = vadd.f32 0.0, %v498
      %500 = vmatmul.f32.gmra.mxu0 %v219
      %v501 = vpop.f32.mrf.mxu0
      %v502 = vadd.f32 0.0, %v501
      %503 = vmatmul.f32.gmra.mxu0 %v222
      %v504 = vpop.f32.mrf.mxu0
      %v505 = vadd.f32 0.0, %v504
      %506 = vmatmul.f32.gmra.mxu0 %v225
      %v507 = vpop.f32.mrf.mxu0
      %v508 = vadd.f32 0.0, %v507
      %509 = vmatmul.f32.gmra.mxu0 %v228
      %v510 = vpop.f32.mrf.mxu0
      %v511 = vadd.f32 0.0, %v510
      %512 = vmatmul.f32.gmra.mxu0 %v231
      %v513 = vpop.f32.mrf.mxu0
      %v514 = vadd.f32 0.0, %v513
      %515 = vmatmul.f32.gmra.mxu0 %v234
      %v516 = vpop.f32.mrf.mxu0
      %v517 = vadd.f32 0.0, %v516
      %518 = vmatmul.f32.gmra.mxu0 %v237
      %v519 = vpop.f32.mrf.mxu0
      %v520 = vadd.f32 0.0, %v519
      %521 = vmatmul.f32.gmra.mxu0 %v240
      %v522 = vpop.f32.mrf.mxu0
      %v523 = vadd.f32 0.0, %v522
      %524 = vmatmul.f32.gmra.mxu0 %v243
      %v525 = vpop.f32.mrf.mxu0
      %v526 = vadd.f32 0.0, %v525
      %527 = vmatmul.f32.gmra.mxu0 %v246
      %v528 = vpop.f32.mrf.mxu0
      %v529 = vadd.f32 0.0, %v528
      %530 = vmatmul.f32.gmra.mxu0 %v249
      %v531 = vpop.f32.mrf.mxu0
      %v532 = vadd.f32 0.0, %v531
      %533 = vmatmul.f32.gmra.mxu0 %v252
      %v534 = vpop.f32.mrf.mxu0
      %v535 = vadd.f32 0.0, %v534
      %536 = vmatmul.f32.gmra.mxu0 %v255
      %v537 = vpop.f32.mrf.mxu0
      %v538 = vadd.f32 0.0, %v537
      %539 = vmatmul.f32.gmra.mxu0 %v258
      %v540 = vpop.f32.mrf.mxu0
      %v541 = vadd.f32 0.0, %v540
      %542 = vmatmul.f32.gmra.mxu0 %v261
      %v543 = vpop.f32.mrf.mxu0
      %v544 = vadd.f32 0.0, %v543
      %545 = vmatmul.f32.gmra.mxu0 %v264
      %v546 = vpop.f32.mrf.mxu0
      %v547 = vadd.f32 0.0, %v546
      %548 = vmatmul.f32.gmra.mxu0 %v267
      %v549 = vpop.f32.mrf.mxu0
      %v550 = vadd.f32 0.0, %v549
      %551 = vmatmul.f32.gmra.mxu0 %v270
      %v552 = vpop.f32.mrf.mxu0
      %v553 = vadd.f32 0.0, %v552
      %554 = vmatmul.f32.gmra.mxu0 %v273
      %v555 = vpop.f32.mrf.mxu0
      %v556 = vadd.f32 0.0, %v555
      %557 = vmatmul.f32.gmra.mxu0 %v276
      %v558 = vpop.f32.mrf.mxu0
      %v559 = vadd.f32 0.0, %v558
      %560 = vmatmul.f32.gmra.mxu0 %v279
      %v561 = vpop.f32.mrf.mxu0
      %v562 = vadd.f32 0.0, %v561
      %563 = vmatmul.f32.gmra.mxu0 %v282
      %v564 = vpop.f32.mrf.mxu0
      %v565 = vadd.f32 0.0, %v564
      %566 = vmatmul.f32.gmra.mxu0 %v285
      %v567 = vpop.f32.mrf.mxu0
      %v568 = vadd.f32 0.0, %v567
      %569 = vdwg.mxu0
      %570 = vmatpush.msra.mxu0 %v350
      %571 = vmatpush.msra.mxu0 %v348
      %572 = vmatpush.msra.mxu0 %v346
      %573 = vmatpush.msra.mxu0 %v344
      %574 = vmatpush.msra.mxu0 %v342
      %575 = vmatpush.msra.mxu0 %v340
      %576 = vmatpush.msra.mxu0 %v338
      %577 = vmatpush.msra.mxu0 %v336
      %578 = vmatpush.msra.mxu0 %v334
      %579 = vmatpush.msra.mxu0 %v332
      %580 = vmatpush.msra.mxu0 %v330
      %581 = vmatpush.msra.mxu0 %v328
      %582 = vmatpush.msra.mxu0 %v326
      %583 = vmatpush.msra.mxu0 %v324
      %584 = vmatpush.msra.mxu0 %v322
      %585 = vmatpush.msra.mxu0 %v320
      %586 = vmatmul.f32.gmra.mxu0 %v193
      %v587 = vpop.f32.mrf.mxu0
      %v588 = vadd.f32 %v475, %v587
      %589 = vmatmul.f32.gmra.mxu0 %v196
      %v590 = vpop.f32.mrf.mxu0
      %v591 = vadd.f32 %v478, %v590
      %592 = vmatmul.f32.gmra.mxu0 %v199
      %v593 = vpop.f32.mrf.mxu0
      %v594 = vadd.f32 %v481, %v593
      %595 = vmatmul.f32.gmra.mxu0 %v202
      %v596 = vpop.f32.mrf.mxu0
      %v597 = vadd.f32 %v484, %v596
      %598 = vmatmul.f32.gmra.mxu0 %v205
      %v599 = vpop.f32.mrf.mxu0
      %v600 = vadd.f32 %v487, %v599
      %601 = vmatmul.f32.gmra.mxu0 %v208
      %v602 = vpop.f32.mrf.mxu0
      %v603 = vadd.f32 %v490, %v602
      %604 = vmatmul.f32.gmra.mxu0 %v211
      %v605 = vpop.f32.mrf.mxu0
      %v606 = vadd.f32 %v493, %v605
      %607 = vmatmul.f32.gmra.mxu0 %v214
      %v608 = vpop.f32.mrf.mxu0
      %v609 = vadd.f32 %v496, %v608
      %610 = vmatmul.f32.gmra.mxu0 %v217
      %v611 = vpop.f32.mrf.mxu0
      %v612 = vadd.f32 %v499, %v611
      %613 = vmatmul.f32.gmra.mxu0 %v220
      %v614 = vpop.f32.mrf.mxu0
      %v615 = vadd.f32 %v502, %v614
      %616 = vmatmul.f32.gmra.mxu0 %v223
      %v617 = vpop.f32.mrf.mxu0
      %v618 = vadd.f32 %v505, %v617
      %619 = vmatmul.f32.gmra.mxu0 %v226
      %v620 = vpop.f32.mrf.mxu0
      %v621 = vadd.f32 %v508, %v620
      %622 = vmatmul.f32.gmra.mxu0 %v229
      %v623 = vpop.f32.mrf.mxu0
      %v624 = vadd.f32 %v511, %v623
      %625 = vmatmul.f32.gmra.mxu0 %v232
      %v626 = vpop.f32.mrf.mxu0
      %v627 = vadd.f32 %v514, %v626
      %628 = vmatmul.f32.gmra.mxu0 %v235
      %v629 = vpop.f32.mrf.mxu0
      %v630 = vadd.f32 %v517, %v629
      %631 = vmatmul.f32.gmra.mxu0 %v238
      %v632 = vpop.f32.mrf.mxu0
      %v633 = vadd.f32 %v520, %v632
      %634 = vmatmul.f32.gmra.mxu0 %v241
      %v635 = vpop.f32.mrf.mxu0
      %v636 = vadd.f32 %v523, %v635
      %637 = vmatmul.f32.gmra.mxu0 %v244
      %v638 = vpop.f32.mrf.mxu0
      %v639 = vadd.f32 %v526, %v638
      %640 = vmatmul.f32.gmra.mxu0 %v247
      %v641 = vpop.f32.mrf.mxu0
      %v642 = vadd.f32 %v529, %v641
      %643 = vmatmul.f32.gmra.mxu0 %v250
      %v644 = vpop.f32.mrf.mxu0
      %v645 = vadd.f32 %v532, %v644
      %646 = vmatmul.f32.gmra.mxu0 %v253
      %v647 = vpop.f32.mrf.mxu0
      %v648 = vadd.f32 %v535, %v647
      %649 = vmatmul.f32.gmra.mxu0 %v256
      %v650 = vpop.f32.mrf.mxu0
      %v651 = vadd.f32 %v538, %v650
      %652 = vmatmul.f32.gmra.mxu0 %v259
      %v653 = vpop.f32.mrf.mxu0
      %v654 = vadd.f32 %v541, %v653
      %655 = vmatmul.f32.gmra.mxu0 %v262
      %v656 = vpop.f32.mrf.mxu0
      %v657 = vadd.f32 %v544, %v656
      %658 = vmatmul.f32.gmra.mxu0 %v265
      %v659 = vpop.f32.mrf.mxu0
      %v660 = vadd.f32 %v547, %v659
      %661 = vmatmul.f32.gmra.mxu0 %v268
      %v662 = vpop.f32.mrf.mxu0
      %v663 = vadd.f32 %v550, %v662
      %664 = vmatmul.f32.gmra.mxu0 %v271
      %v665 = vpop.f32.mrf.mxu0
      %v666 = vadd.f32 %v553, %v665
      %667 = vmatmul.f32.gmra.mxu0 %v274
      %v668 = vpop.f32.mrf.mxu0
      %v669 = vadd.f32 %v556, %v668
      %670 = vmatmul.f32.gmra.mxu0 %v277
      %v671 = vpop.f32.mrf.mxu0
      %v672 = vadd.f32 %v559, %v671
      %673 = vmatmul.f32.gmra.mxu0 %v280
      %v674 = vpop.f32.mrf.mxu0
      %v675 = vadd.f32 %v562, %v674
      %676 = vmatmul.f32.gmra.mxu0 %v283
      %v677 = vpop.f32.mrf.mxu0
      %v678 = vadd.f32 %v565, %v677
      %679 = vmatmul.f32.gmra.mxu0 %v286
      %v680 = vpop.f32.mrf.mxu0
      %v681 = vadd.f32 %v568, %v680
      %682 = vdwg.mxu0
      %683 = vmatpush.msra.mxu0 0.0
      %684 = vmatpush.msra.mxu0 0.0
      %685 = vmatpush.msra.mxu0 0.0
      %686 = vmatpush.msra.mxu0 0.0
      %687 = vmatpush.msra.mxu0 0.0
      %688 = vmatpush.msra.mxu0 0.0
      %689 = vmatpush.msra.mxu0 0.0
      %690 = vmatpush.msra.mxu0 0.0
      %691 = vmatpush.msra.mxu0 0.0
      %692 = vmatpush.msra.mxu0 0.0
      %693 = vmatpush.msra.mxu0 0.0
      %694 = vmatpush.msra.mxu0 0.0
      %695 = vmatpush.msra.mxu0 %v358
      %696 = vmatpush.msra.mxu0 %v356
      %697 = vmatpush.msra.mxu0 %v354
      %698 = vmatpush.msra.mxu0 %v352
      %699 = vmatmul.f32.gmra.mxu0 %v362
      %v700 = vpop.f32.mrf.mxu0
      %v701 = vadd.f32 %v588, %v700
      %702 = vmatmul.f32.gmra.mxu0 %v365
      %v703 = vpop.f32.mrf.mxu0
      %v704 = vadd.f32 %v591, %v703
      %705 = vmatmul.f32.gmra.mxu0 %v368
      %v706 = vpop.f32.mrf.mxu0
      %v707 = vadd.f32 %v594, %v706
      %708 = vmatmul.f32.gmra.mxu0 %v371
      %v709 = vpop.f32.mrf.mxu0
      %v710 = vadd.f32 %v597, %v709
      %711 = vmatmul.f32.gmra.mxu0 %v374
      %v712 = vpop.f32.mrf.mxu0
      %v713 = vadd.f32 %v600, %v712
      %714 = vmatmul.f32.gmra.mxu0 %v377
      %v715 = vpop.f32.mrf.mxu0
      %v716 = vadd.f32 %v603, %v715
      %717 = vmatmul.f32.gmra.mxu0 %v380
      %v718 = vpop.f32.mrf.mxu0
      %v719 = vadd.f32 %v606, %v718
      %720 = vmatmul.f32.gmra.mxu0 %v383
      %v721 = vpop.f32.mrf.mxu0
      %v722 = vadd.f32 %v609, %v721
      %723 = vmatmul.f32.gmra.mxu0 %v386
      %v724 = vpop.f32.mrf.mxu0
      %v725 = vadd.f32 %v612, %v724
      %726 = vmatmul.f32.gmra.mxu0 %v389
      %v727 = vpop.f32.mrf.mxu0
      %v728 = vadd.f32 %v615, %v727
      %729 = vmatmul.f32.gmra.mxu0 %v392
      %v730 = vpop.f32.mrf.mxu0
      %v731 = vadd.f32 %v618, %v730
      %732 = vmatmul.f32.gmra.mxu0 %v395
      %v733 = vpop.f32.mrf.mxu0
      %v734 = vadd.f32 %v621, %v733
      %735 = vmatmul.f32.gmra.mxu0 %v398
      %v736 = vpop.f32.mrf.mxu0
      %v737 = vadd.f32 %v624, %v736
      %738 = vmatmul.f32.gmra.mxu0 %v401
      %v739 = vpop.f32.mrf.mxu0
      %v740 = vadd.f32 %v627, %v739
      %741 = vmatmul.f32.gmra.mxu0 %v404
      %v742 = vpop.f32.mrf.mxu0
      %v743 = vadd.f32 %v630, %v742
      %744 = vmatmul.f32.gmra.mxu0 %v407
      %v745 = vpop.f32.mrf.mxu0
      %v746 = vadd.f32 %v633, %v745
      %747 = vmatmul.f32.gmra.mxu0 %v410
      %v748 = vpop.f32.mrf.mxu0
      %v749 = vadd.f32 %v636, %v748
      %750 = vmatmul.f32.gmra.mxu0 %v413
      %v751 = vpop.f32.mrf.mxu0
      %v752 = vadd.f32 %v639, %v751
      %753 = vmatmul.f32.gmra.mxu0 %v416
      %v754 = vpop.f32.mrf.mxu0
      %v755 = vadd.f32 %v642, %v754
      %756 = vmatmul.f32.gmra.mxu0 %v419
      %v757 = vpop.f32.mrf.mxu0
      %v758 = vadd.f32 %v645, %v757
      %759 = vmatmul.f32.gmra.mxu0 %v422
      %v760 = vpop.f32.mrf.mxu0
      %v761 = vadd.f32 %v648, %v760
      %762 = vmatmul.f32.gmra.mxu0 %v425
      %v763 = vpop.f32.mrf.mxu0
      %v764 = vadd.f32 %v651, %v763
      %765 = vmatmul.f32.gmra.mxu0 %v428
      %v766 = vpop.f32.mrf.mxu0
      %v767 = vadd.f32 %v654, %v766
      %768 = vmatmul.f32.gmra.mxu0 %v431
      %v769 = vpop.f32.mrf.mxu0
      %v770 = vadd.f32 %v657, %v769
      %771 = vmatmul.f32.gmra.mxu0 %v434
      %v772 = vpop.f32.mrf.mxu0
      %v773 = vadd.f32 %v660, %v772
      %774 = vmatmul.f32.gmra.mxu0 %v437
      %v775 = vpop.f32.mrf.mxu0
      %v776 = vadd.f32 %v663, %v775
      %777 = vmatmul.f32.gmra.mxu0 %v440
      %v778 = vpop.f32.mrf.mxu0
      %v779 = vadd.f32 %v666, %v778
      %780 = vmatmul.f32.gmra.mxu0 %v443
      %v781 = vpop.f32.mrf.mxu0
      %v782 = vadd.f32 %v669, %v781
      %783 = vmatmul.f32.gmra.mxu0 %v446
      %v784 = vpop.f32.mrf.mxu0
      %v785 = vadd.f32 %v672, %v784
      %786 = vmatmul.f32.gmra.mxu0 %v449
      %v787 = vpop.f32.mrf.mxu0
      %v788 = vadd.f32 %v675, %v787
      %789 = vmatmul.f32.gmra.mxu0 %v452
      %v790 = vpop.f32.mrf.mxu0
      %v791 = vadd.f32 %v678, %v790
      %792 = vmatmul.f32.gmra.mxu0 %v455
      %v793 = vpop.f32.mrf.mxu0
      %v794 = vadd.f32 %v681, %v793
      %795 = vdwg.mxu0
      %796 = vmatpush.msra.mxu0 %v319
      %797 = vmatpush.msra.mxu0 %v317
      %798 = vmatpush.msra.mxu0 %v315
      %799 = vmatpush.msra.mxu0 %v313
      %800 = vmatpush.msra.mxu0 %v311
      %801 = vmatpush.msra.mxu0 %v309
      %802 = vmatpush.msra.mxu0 %v307
      %803 = vmatpush.msra.mxu0 %v305
      %804 = vmatpush.msra.mxu0 %v303
      %805 = vmatpush.msra.mxu0 %v301
      %806 = vmatpush.msra.mxu0 %v299
      %807 = vmatpush.msra.mxu0 %v297
      %808 = vmatpush.msra.mxu0 %v295
      %809 = vmatpush.msra.mxu0 %v293
      %810 = vmatpush.msra.mxu0 %v291
      %811 = vmatpush.msra.mxu0 %v289
      %812 = vmatmul.f32.gmra.mxu0 %v192
      %v813 = vpop.f32.mrf.mxu0
      %v814 = vadd.f32 0.0, %v813
      %815 = vmatmul.f32.gmra.mxu0 %v195
      %v816 = vpop.f32.mrf.mxu0
      %v817 = vadd.f32 0.0, %v816
      %818 = vmatmul.f32.gmra.mxu0 %v198
      %v819 = vpop.f32.mrf.mxu0
      %v820 = vadd.f32 0.0, %v819
      %821 = vmatmul.f32.gmra.mxu0 %v201
      %v822 = vpop.f32.mrf.mxu0
      %v823 = vadd.f32 0.0, %v822
      %824 = vmatmul.f32.gmra.mxu0 %v204
      %v825 = vpop.f32.mrf.mxu0
      %v826 = vadd.f32 0.0, %v825
      %827 = vmatmul.f32.gmra.mxu0 %v207
      %v828 = vpop.f32.mrf.mxu0
      %v829 = vadd.f32 0.0, %v828
      %830 = vmatmul.f32.gmra.mxu0 %v210
      %v831 = vpop.f32.mrf.mxu0
      %v832 = vadd.f32 0.0, %v831
      %833 = vmatmul.f32.gmra.mxu0 %v213
      %v834 = vpop.f32.mrf.mxu0
      %v835 = vadd.f32 0.0, %v834
      %836 = vmatmul.f32.gmra.mxu0 %v216
      %v837 = vpop.f32.mrf.mxu0
      %v838 = vadd.f32 0.0, %v837
      %839 = vmatmul.f32.gmra.mxu0 %v219
      %v840 = vpop.f32.mrf.mxu0
      %v841 = vadd.f32 0.0, %v840
      %842 = vmatmul.f32.gmra.mxu0 %v222
      %v843 = vpop.f32.mrf.mxu0
      %v844 = vadd.f32 0.0, %v843
      %845 = vmatmul.f32.gmra.mxu0 %v225
      %v846 = vpop.f32.mrf.mxu0
      %v847 = vadd.f32 0.0, %v846
      %848 = vmatmul.f32.gmra.mxu0 %v228
      %v849 = vpop.f32.mrf.mxu0
      %v850 = vadd.f32 0.0, %v849
      %851 = vmatmul.f32.gmra.mxu0 %v231
      %v852 = vpop.f32.mrf.mxu0
      %v853 = vadd.f32 0.0, %v852
      %854 = vmatmul.f32.gmra.mxu0 %v234
      %v855 = vpop.f32.mrf.mxu0
      %v856 = vadd.f32 0.0, %v855
      %857 = vmatmul.f32.gmra.mxu0 %v237
      %v858 = vpop.f32.mrf.mxu0
      %v859 = vadd.f32 0.0, %v858
      %860 = vmatmul.f32.gmra.mxu0 %v240
      %v861 = vpop.f32.mrf.mxu0
      %v862 = vadd.f32 0.0, %v861
      %863 = vmatmul.f32.gmra.mxu0 %v243
      %v864 = vpop.f32.mrf.mxu0
      %v865 = vadd.f32 0.0, %v864
      %866 = vmatmul.f32.gmra.mxu0 %v246
      %v867 = vpop.f32.mrf.mxu0
      %v868 = vadd.f32 0.0, %v867
      %869 = vmatmul.f32.gmra.mxu0 %v249
      %v870 = vpop.f32.mrf.mxu0
      %v871 = vadd.f32 0.0, %v870
      %872 = vmatmul.f32.gmra.mxu0 %v252
      %v873 = vpop.f32.mrf.mxu0
      %v874 = vadd.f32 0.0, %v873
      %875 = vmatmul.f32.gmra.mxu0 %v255
      %v876 = vpop.f32.mrf.mxu0
      %v877 = vadd.f32 0.0, %v876
      %878 = vmatmul.f32.gmra.mxu0 %v258
      %v879 = vpop.f32.mrf.mxu0
      %v880 = vadd.f32 0.0, %v879
      %881 = vmatmul.f32.gmra.mxu0 %v261
      %v882 = vpop.f32.mrf.mxu0
      %v883 = vadd.f32 0.0, %v882
      %884 = vmatmul.f32.gmra.mxu0 %v264
      %v885 = vpop.f32.mrf.mxu0
      %v886 = vadd.f32 0.0, %v885
      %887 = vmatmul.f32.gmra.mxu0 %v267
      %v888 = vpop.f32.mrf.mxu0
      %v889 = vadd.f32 0.0, %v888
      %890 = vmatmul.f32.gmra.mxu0 %v270
      %v891 = vpop.f32.mrf.mxu0
      %v892 = vadd.f32 0.0, %v891
      %893 = vmatmul.f32.gmra.mxu0 %v273
      %v894 = vpop.f32.mrf.mxu0
      %v895 = vadd.f32 0.0, %v894
      %896 = vmatmul.f32.gmra.mxu0 %v276
      %v897 = vpop.f32.mrf.mxu0
      %v898 = vadd.f32 0.0, %v897
      %899 = vmatmul.f32.gmra.mxu0 %v279
      %v900 = vpop.f32.mrf.mxu0
      %v901 = vadd.f32 0.0, %v900
      %902 = vmatmul.f32.gmra.mxu0 %v282
      %v903 = vpop.f32.mrf.mxu0
      %v904 = vadd.f32 0.0, %v903
      %905 = vmatmul.f32.gmra.mxu0 %v285
      %v906 = vpop.f32.mrf.mxu0
      %v907 = vadd.f32 0.0, %v906
      %908 = vdwg.mxu0
      %909 = vmatpush.msra.mxu0 %v351
      %910 = vmatpush.msra.mxu0 %v349
      %911 = vmatpush.msra.mxu0 %v347
      %912 = vmatpush.msra.mxu0 %v345
      %913 = vmatpush.msra.mxu0 %v343
      %914 = vmatpush.msra.mxu0 %v341
      %915 = vmatpush.msra.mxu0 %v339
      %916 = vmatpush.msra.mxu0 %v337
      %917 = vmatpush.msra.mxu0 %v335
      %918 = vmatpush.msra.mxu0 %v333
      %919 = vmatpush.msra.mxu0 %v331
      %920 = vmatpush.msra.mxu0 %v329
      %921 = vmatpush.msra.mxu0 %v327
      %922 = vmatpush.msra.mxu0 %v325
      %923 = vmatpush.msra.mxu0 %v323
      %924 = vmatpush.msra.mxu0 %v321
      %925 = vmatmul.f32.gmra.mxu0 %v193
      %v926 = vpop.f32.mrf.mxu0
      %v927 = vadd.f32 %v814, %v926
      %928 = vmatmul.f32.gmra.mxu0 %v196
      %v929 = vpop.f32.mrf.mxu0
      %v930 = vadd.f32 %v817, %v929
      %931 = vmatmul.f32.gmra.mxu0 %v199
      %v932 = vpop.f32.mrf.mxu0
      %v933 = vadd.f32 %v820, %v932
      %934 = vmatmul.f32.gmra.mxu0 %v202
      %v935 = vpop.f32.mrf.mxu0
      %v936 = vadd.f32 %v823, %v935
      %937 = vmatmul.f32.gmra.mxu0 %v205
      %v938 = vpop.f32.mrf.mxu0
      %v939 = vadd.f32 %v826, %v938
      %940 = vmatmul.f32.gmra.mxu0 %v208
      %v941 = vpop.f32.mrf.mxu0
      %v942 = vadd.f32 %v829, %v941
      %943 = vmatmul.f32.gmra.mxu0 %v211
      %v944 = vpop.f32.mrf.mxu0
      %v945 = vadd.f32 %v832, %v944
      %946 = vmatmul.f32.gmra.mxu0 %v214
      %v947 = vpop.f32.mrf.mxu0
      %v948 = vadd.f32 %v835, %v947
      %949 = vmatmul.f32.gmra.mxu0 %v217
      %v950 = vpop.f32.mrf.mxu0
      %v951 = vadd.f32 %v838, %v950
      %952 = vmatmul.f32.gmra.mxu0 %v220
      %v953 = vpop.f32.mrf.mxu0
      %v954 = vadd.f32 %v841, %v953
      %955 = vmatmul.f32.gmra.mxu0 %v223
      %v956 = vpop.f32.mrf.mxu0
      %v957 = vadd.f32 %v844, %v956
      %958 = vmatmul.f32.gmra.mxu0 %v226
      %v959 = vpop.f32.mrf.mxu0
      %v960 = vadd.f32 %v847, %v959
      %961 = vmatmul.f32.gmra.mxu0 %v229
      %v962 = vpop.f32.mrf.mxu0
      %v963 = vadd.f32 %v850, %v962
      %964 = vmatmul.f32.gmra.mxu0 %v232
      %v965 = vpop.f32.mrf.mxu0
      %v966 = vadd.f32 %v853, %v965
      %967 = vmatmul.f32.gmra.mxu0 %v235
      %v968 = vpop.f32.mrf.mxu0
      %v969 = vadd.f32 %v856, %v968
      %970 = vmatmul.f32.gmra.mxu0 %v238
      %v971 = vpop.f32.mrf.mxu0
      %v972 = vadd.f32 %v859, %v971
      %973 = vmatmul.f32.gmra.mxu0 %v241
      %v974 = vpop.f32.mrf.mxu0
      %v975 = vadd.f32 %v862, %v974
      %976 = vmatmul.f32.gmra.mxu0 %v244
      %v977 = vpop.f32.mrf.mxu0
      %v978 = vadd.f32 %v865, %v977
      %979 = vmatmul.f32.gmra.mxu0 %v247
      %v980 = vpop.f32.mrf.mxu0
      %v981 = vadd.f32 %v868, %v980
      %982 = vmatmul.f32.gmra.mxu0 %v250
      %v983 = vpop.f32.mrf.mxu0
      %v984 = vadd.f32 %v871, %v983
      %985 = vmatmul.f32.gmra.mxu0 %v253
      %v986 = vpop.f32.mrf.mxu0
      %v987 = vadd.f32 %v874, %v986
      %988 = vmatmul.f32.gmra.mxu0 %v256
      %v989 = vpop.f32.mrf.mxu0
      %v990 = vadd.f32 %v877, %v989
      %991 = vmatmul.f32.gmra.mxu0 %v259
      %v992 = vpop.f32.mrf.mxu0
      %v993 = vadd.f32 %v880, %v992
      %994 = vmatmul.f32.gmra.mxu0 %v262
      %v995 = vpop.f32.mrf.mxu0
      %v996 = vadd.f32 %v883, %v995
      %997 = vmatmul.f32.gmra.mxu0 %v265
      %v998 = vpop.f32.mrf.mxu0
      %v999 = vadd.f32 %v886, %v998
      %1000 = vmatmul.f32.gmra.mxu0 %v268
      %v1001 = vpop.f32.mrf.mxu0
      %v1002 = vadd.f32 %v889, %v1001
      %1003 = vmatmul.f32.gmra.mxu0 %v271
      %v1004 = vpop.f32.mrf.mxu0
      %v1005 = vadd.f32 %v892, %v1004
      %1006 = vmatmul.f32.gmra.mxu0 %v274
      %v1007 = vpop.f32.mrf.mxu0
      %v1008 = vadd.f32 %v895, %v1007
      %1009 = vmatmul.f32.gmra.mxu0 %v277
      %v1010 = vpop.f32.mrf.mxu0
      %v1011 = vadd.f32 %v898, %v1010
      %1012 = vmatmul.f32.gmra.mxu0 %v280
      %v1013 = vpop.f32.mrf.mxu0
      %v1014 = vadd.f32 %v901, %v1013
      %1015 = vmatmul.f32.gmra.mxu0 %v283
      %v1016 = vpop.f32.mrf.mxu0
      %v1017 = vadd.f32 %v904, %v1016
      %1018 = vmatmul.f32.gmra.mxu0 %v286
      %v1019 = vpop.f32.mrf.mxu0
      %v1020 = vadd.f32 %v907, %v1019
      %1021 = vdwg.mxu0
      %1022 = vmatpush.msra.mxu0 0.0
      %1023 = vmatpush.msra.mxu0 0.0
      %1024 = vmatpush.msra.mxu0 0.0
      %1025 = vmatpush.msra.mxu0 0.0
      %1026 = vmatpush.msra.mxu0 0.0
      %1027 = vmatpush.msra.mxu0 0.0
      %1028 = vmatpush.msra.mxu0 0.0
      %1029 = vmatpush.msra.mxu0 0.0
      %1030 = vmatpush.msra.mxu0 0.0
      %1031 = vmatpush.msra.mxu0 0.0
      %1032 = vmatpush.msra.mxu0 0.0
      %1033 = vmatpush.msra.mxu0 0.0
      %1034 = vmatpush.msra.mxu0 %v359
      %1035 = vmatpush.msra.mxu0 %v357
      %1036 = vmatpush.msra.mxu0 %v355
      %1037 = vmatpush.msra.mxu0 %v353
      %1038 = vmatmul.f32.gmra.mxu0 %v362
      %v1039 = vpop.f32.mrf.mxu0
      %v1040 = vadd.f32 %v927, %v1039
      %1041 = vmatmul.f32.gmra.mxu0 %v365
      %v1042 = vpop.f32.mrf.mxu0
      %v1043 = vadd.f32 %v930, %v1042
      %1044 = vmatmul.f32.gmra.mxu0 %v368
      %v1045 = vpop.f32.mrf.mxu0
      %v1046 = vadd.f32 %v933, %v1045
      %1047 = vmatmul.f32.gmra.mxu0 %v371
      %v1048 = vpop.f32.mrf.mxu0
      %v1049 = vadd.f32 %v936, %v1048
      %1050 = vmatmul.f32.gmra.mxu0 %v374
      %v1051 = vpop.f32.mrf.mxu0
      %v1052 = vadd.f32 %v939, %v1051
      %1053 = vmatmul.f32.gmra.mxu0 %v377
      %v1054 = vpop.f32.mrf.mxu0
      %v1055 = vadd.f32 %v942, %v1054
      %1056 = vmatmul.f32.gmra.mxu0 %v380
      %v1057 = vpop.f32.mrf.mxu0
      %v1058 = vadd.f32 %v945, %v1057
      %1059 = vmatmul.f32.gmra.mxu0 %v383
      %v1060 = vpop.f32.mrf.mxu0
      %v1061 = vadd.f32 %v948, %v1060
      %1062 = vmatmul.f32.gmra.mxu0 %v386
      %v1063 = vpop.f32.mrf.mxu0
      %v1064 = vadd.f32 %v951, %v1063
      %1065 = vmatmul.f32.gmra.mxu0 %v389
      %v1066 = vpop.f32.mrf.mxu0
      %v1067 = vadd.f32 %v954, %v1066
      %1068 = vmatmul.f32.gmra.mxu0 %v392
      %v1069 = vpop.f32.mrf.mxu0
      %v1070 = vadd.f32 %v957, %v1069
      %1071 = vmatmul.f32.gmra.mxu0 %v395
      %v1072 = vpop.f32.mrf.mxu0
      %v1073 = vadd.f32 %v960, %v1072
      %1074 = vmatmul.f32.gmra.mxu0 %v398
      %v1075 = vpop.f32.mrf.mxu0
      %v1076 = vadd.f32 %v963, %v1075
      %1077 = vmatmul.f32.gmra.mxu0 %v401
      %v1078 = vpop.f32.mrf.mxu0
      %v1079 = vadd.f32 %v966, %v1078
      %1080 = vmatmul.f32.gmra.mxu0 %v404
      %v1081 = vpop.f32.mrf.mxu0
      %v1082 = vadd.f32 %v969, %v1081
      %1083 = vmatmul.f32.gmra.mxu0 %v407
      %v1084 = vpop.f32.mrf.mxu0
      %v1085 = vadd.f32 %v972, %v1084
      %1086 = vmatmul.f32.gmra.mxu0 %v410
      %v1087 = vpop.f32.mrf.mxu0
      %v1088 = vadd.f32 %v975, %v1087
      %1089 = vmatmul.f32.gmra.mxu0 %v413
      %v1090 = vpop.f32.mrf.mxu0
      %v1091 = vadd.f32 %v978, %v1090
      %1092 = vmatmul.f32.gmra.mxu0 %v416
      %v1093 = vpop.f32.mrf.mxu0
      %v1094 = vadd.f32 %v981, %v1093
      %1095 = vmatmul.f32.gmra.mxu0 %v419
      %v1096 = vpop.f32.mrf.mxu0
      %v1097 = vadd.f32 %v984, %v1096
      %1098 = vmatmul.f32.gmra.mxu0 %v422
      %v1099 = vpop.f32.mrf.mxu0
      %v1100 = vadd.f32 %v987, %v1099
      %1101 = vmatmul.f32.gmra.mxu0 %v425
      %v1102 = vpop.f32.mrf.mxu0
      %v1103 = vadd.f32 %v990, %v1102
      %1104 = vmatmul.f32.gmra.mxu0 %v428
      %v1105 = vpop.f32.mrf.mxu0
      %v1106 = vadd.f32 %v993, %v1105
      %1107 = vmatmul.f32.gmra.mxu0 %v431
      %v1108 = vpop.f32.mrf.mxu0
      %v1109 = vadd.f32 %v996, %v1108
      %1110 = vmatmul.f32.gmra.mxu0 %v434
      %v1111 = vpop.f32.mrf.mxu0
      %v1112 = vadd.f32 %v999, %v1111
      %1113 = vmatmul.f32.gmra.mxu0 %v437
      %v1114 = vpop.f32.mrf.mxu0
      %v1115 = vadd.f32 %v1002, %v1114
      %1116 = vmatmul.f32.gmra.mxu0 %v440
      %v1117 = vpop.f32.mrf.mxu0
      %v1118 = vadd.f32 %v1005, %v1117
      %1119 = vmatmul.f32.gmra.mxu0 %v443
      %v1120 = vpop.f32.mrf.mxu0
      %v1121 = vadd.f32 %v1008, %v1120
      %1122 = vmatmul.f32.gmra.mxu0 %v446
      %v1123 = vpop.f32.mrf.mxu0
      %v1124 = vadd.f32 %v1011, %v1123
      %1125 = vmatmul.f32.gmra.mxu0 %v449
      %v1126 = vpop.f32.mrf.mxu0
      %v1127 = vadd.f32 %v1014, %v1126
      %1128 = vmatmul.f32.gmra.mxu0 %v452
      %v1129 = vpop.f32.mrf.mxu0
      %v1130 = vadd.f32 %v1017, %v1129
      %1131 = vmatmul.f32.gmra.mxu0 %v455
      %v1132 = vpop.f32.mrf.mxu0
      %v1133 = vadd.f32 %v1020, %v1132
      %1134 = vdwg.mxu0
      %1135 = vst [vmem:[%s185] sm:$0xff] %v701
      %1136 = vst [vmem:[%s185 + $0x8] sm:$0xff] %v1040
      %1137 = vst [vmem:[%s185 + $0x10] sm:$0xff] %v704
      %1138 = vst [vmem:[%s185 + $0x18] sm:$0xff] %v1043
      %1139 = vst [vmem:[%s185 + $0x20] sm:$0xff] %v707
      %1140 = vst [vmem:[%s185 + $0x28] sm:$0xff] %v1046
      %1141 = vst [vmem:[%s185 + $0x30] sm:$0xff] %v710
      %1142 = vst [vmem:[%s185 + $0x38] sm:$0xff] %v1049
      %1143 = vst [vmem:[%s185 + $0x40] sm:$0xff] %v713
      %1144 = vst [vmem:[%s185 + $0x48] sm:$0xff] %v1052
      %1145 = vst [vmem:[%s185 + $0x50] sm:$0xff] %v716
      %1146 = vst [vmem:[%s185 + $0x58] sm:$0xff] %v1055
      %1147 = vst [vmem:[%s185 + $0x60] sm:$0xff] %v719
      %1148 = vst [vmem:[%s185 + $0x68] sm:$0xff] %v1058
      %1149 = vst [vmem:[%s185 + $0x70] sm:$0xff] %v722
      %1150 = vst [vmem:[%s185 + $0x78] sm:$0xff] %v1061
      %1151 = vst [vmem:[%s185 + $0x80] sm:$0xff] %v725
      %1152 = vst [vmem:[%s185 + $0x88] sm:$0xff] %v1064
      %1153 = vst [vmem:[%s185 + $0x90] sm:$0xff] %v728
      %1154 = vst [vmem:[%s185 + $0x98] sm:$0xff] %v1067
      %1155 = vst [vmem:[%s185 + $0xa0] sm:$0xff] %v731
      %1156 = vst [vmem:[%s185 + $0xa8] sm:$0xff] %v1070
      %1157 = vst [vmem:[%s185 + $0xb0] sm:$0xff] %v734
      %1158 = vst [vmem:[%s185 + $0xb8] sm:$0xff] %v1073
      %1159 = vst [vmem:[%s185 + $0xc0] sm:$0xff] %v737
      %1160 = vst [vmem:[%s185 + $0xc8] sm:$0xff] %v1076
      %1161 = vst [vmem:[%s185 + $0xd0] sm:$0xff] %v740
      %1162 = vst [vmem:[%s185 + $0xd8] sm:$0xff] %v1079
      %1163 = vst [vmem:[%s185 + $0xe0] sm:$0xff] %v743
      %1164 = vst [vmem:[%s185 + $0xe8] sm:$0xff] %v1082
      %1165 = vst [vmem:[%s185 + $0xf0] sm:$0xff] %v746
      %1166 = vst [vmem:[%s185 + $0xf8] sm:$0xff] %v1085
      %1167 = vst [vmem:[%s185 + $0x100] sm:$0xff] %v749
      %1168 = vst [vmem:[%s185 + $0x108] sm:$0xff] %v1088
      %1169 = vst [vmem:[%s185 + $0x110] sm:$0xff] %v752
      %1170 = vst [vmem:[%s185 + $0x118] sm:$0xff] %v1091
      %1171 = vst [vmem:[%s185 + $0x120] sm:$0xff] %v755
      %1172 = vst [vmem:[%s185 + $0x128] sm:$0xff] %v1094
      %1173 = vst [vmem:[%s185 + $0x130] sm:$0xff] %v758
      %1174 = vst [vmem:[%s185 + $0x138] sm:$0xff] %v1097
      %1175 = vst [vmem:[%s185 + $0x140] sm:$0xff] %v761
      %1176 = vst [vmem:[%s185 + $0x148] sm:$0xff] %v1100
      %1177 = vst [vmem:[%s185 + $0x150] sm:$0xff] %v764
      %1178 = vst [vmem:[%s185 + $0x158] sm:$0xff] %v1103
      %1179 = vst [vmem:[%s185 + $0x160] sm:$0xff] %v767
      %1180 = vst [vmem:[%s185 + $0x168] sm:$0xff] %v1106
      %1181 = vst [vmem:[%s185 + $0x170] sm:$0xff] %v770
      %1182 = vst [vmem:[%s185 + $0x178] sm:$0xff] %v1109
      %1183 = vst [vmem:[%s185 + $0x180] sm:$0xff] %v773
      %1184 = vst [vmem:[%s185 + $0x188] sm:$0xff] %v1112
      %1185 = vst [vmem:[%s185 + $0x190] sm:$0xff] %v776
      %1186 = vst [vmem:[%s185 + $0x198] sm:$0xff] %v1115
      %1187 = vst [vmem:[%s185 + $0x1a0] sm:$0xff] %v779
      %1188 = vst [vmem:[%s185 + $0x1a8] sm:$0xff] %v1118
      %1189 = vst [vmem:[%s185 + $0x1b0] sm:$0xff] %v782
      %1190 = vst [vmem:[%s185 + $0x1b8] sm:$0xff] %v1121
      %1191 = vst [vmem:[%s185 + $0x1c0] sm:$0xff] %v785
      %1192 = vst [vmem:[%s185 + $0x1c8] sm:$0xff] %v1124
      %1193 = vst [vmem:[%s185 + $0x1d0] sm:$0xff] %v788
      %1194 = vst [vmem:[%s185 + $0x1d8] sm:$0xff] %v1127
      %1195 = vst [vmem:[%s185 + $0x1e0] sm:$0xff] %v791
      %1196 = vst [vmem:[%s185 + $0x1e8] sm:$0xff] %v1130
      %1197 = vst [vmem:[%s185 + $0x1f0] sm:$0xff] %v794
      %1198 = vst [vmem:[%s185 + $0x1f8] sm:$0xff] %v1133
      %v1199 = vadd.f32 %v701, %v704
      %v1200 = vadd.f32 %v1199, %v707
      %v1201 = vadd.f32 %v1200, %v710
      %v1202 = vadd.f32 %v1201, %v713
      %v1203 = vadd.f32 %v1202, %v716
      %v1204 = vadd.f32 %v1203, %v719
      %v1205 = vadd.f32 %v1204, %v722
      %v1206 = vadd.f32 %v1205, %v725
      %v1207 = vadd.f32 %v1206, %v728
      %v1208 = vadd.f32 %v1207, %v731
      %v1209 = vadd.f32 %v1208, %v734
      %v1210 = vadd.f32 %v1209, %v737
      %v1211 = vadd.f32 %v1210, %v740
      %v1212 = vadd.f32 %v1211, %v743
      %v1213 = vadd.f32 %v1212, %v746
      %v1214 = vadd.f32 %v1213, %v749
      %v1215 = vadd.f32 %v1214, %v752
      %v1216 = vadd.f32 %v1215, %v755
      %v1217 = vadd.f32 %v1216, %v758
      %v1218 = vadd.f32 %v1217, %v761
      %v1219 = vadd.f32 %v1218, %v764
      %v1220 = vadd.f32 %v1219, %v767
      %v1221 = vadd.f32 %v1220, %v770
      %v1222 = vadd.f32 %v1221, %v773
      %v1223 = vadd.f32 %v1222, %v776
      %v1224 = vadd.f32 %v1223, %v779
      %v1225 = vadd.f32 %v1224, %v782
      %v1226 = vadd.f32 %v1225, %v785
      %v1227 = vadd.f32 %v1226, %v788
      %v1228 = vadd.f32 %v1227, %v791
      %v1229 = vadd.f32 %v1228, %v794
      %v1230 = vrot.slane %v1229, 4
      %v1231 = vadd.f32 %v1229, %v1230
      %v1232 = vrot.slane %v1231, 2
      %v1233 = vadd.f32 %v1231, %v1232
      %v1234 = vrot.slane %v1233, 1
      %v1235 = vadd.f32 %v1233, %v1234
      %v1236 = vadd.f32 %v1040, %v1043
      %v1237 = vadd.f32 %v1236, %v1046
      %v1238 = vadd.f32 %v1237, %v1049
      %v1239 = vadd.f32 %v1238, %v1052
      %v1240 = vadd.f32 %v1239, %v1055
      %v1241 = vadd.f32 %v1240, %v1058
      %v1242 = vadd.f32 %v1241, %v1061
      %v1243 = vadd.f32 %v1242, %v1064
      %v1244 = vadd.f32 %v1243, %v1067
      %v1245 = vadd.f32 %v1244, %v1070
      %v1246 = vadd.f32 %v1245, %v1073
      %v1247 = vadd.f32 %v1246, %v1076
      %v1248 = vadd.f32 %v1247, %v1079
      %v1249 = vadd.f32 %v1248, %v1082
      %v1250 = vadd.f32 %v1249, %v1085
      %v1251 = vadd.f32 %v1250, %v1088
      %v1252 = vadd.f32 %v1251, %v1091
      %v1253 = vadd.f32 %v1252, %v1094
      %v1254 = vadd.f32 %v1253, %v1097
      %v1255 = vadd.f32 %v1254, %v1100
      %v1256 = vadd.f32 %v1255, %v1103
      %v1257 = vadd.f32 %v1256, %v1106
      %v1258 = vadd.f32 %v1257, %v1109
      %v1259 = vadd.f32 %v1258, %v1112
      %v1260 = vadd.f32 %v1259, %v1115
      %v1261 = vadd.f32 %v1260, %v1118
      %v1262 = vadd.f32 %v1261, %v1121
      %v1263 = vadd.f32 %v1262, %v1124
      %v1264 = vadd.f32 %v1263, %v1127
      %v1265 = vadd.f32 %v1264, %v1130
      %v1266 = vadd.f32 %v1265, %v1133
      %v1267 = vrot.slane %v1266, 4
      %v1268 = vadd.f32 %v1266, %v1267
      %v1269 = vrot.slane %v1268, 2
      %v1270 = vadd.f32 %v1268, %v1269
      %v1271 = vrot.slane %v1270, 1
      %v1272 = vadd.f32 %v1270, %v1271
      %v1273 = vmul.f32 %v701, %v701
      %v1274 = vmul.f32 %v1040, %v1040
      %v1275 = vmul.f32 %v704, %v704
      %v1276 = vmul.f32 %v1043, %v1043
      %v1277 = vmul.f32 %v707, %v707
      %v1278 = vmul.f32 %v1046, %v1046
      %v1279 = vmul.f32 %v710, %v710
      %v1280 = vmul.f32 %v1049, %v1049
      %v1281 = vmul.f32 %v713, %v713
      %v1282 = vmul.f32 %v1052, %v1052
      %v1283 = vmul.f32 %v716, %v716
      %v1284 = vmul.f32 %v1055, %v1055
      %v1285 = vmul.f32 %v719, %v719
      %v1286 = vmul.f32 %v1058, %v1058
      %v1287 = vmul.f32 %v722, %v722
      %v1288 = vmul.f32 %v1061, %v1061
      %v1289 = vmul.f32 %v725, %v725
      %v1290 = vmul.f32 %v1064, %v1064
      %v1291 = vmul.f32 %v728, %v728
      %v1292 = vmul.f32 %v1067, %v1067
      %v1293 = vmul.f32 %v731, %v731
      %v1294 = vmul.f32 %v1070, %v1070
      %v1295 = vmul.f32 %v734, %v734
      %v1296 = vmul.f32 %v1073, %v1073
      %v1297 = vmul.f32 %v737, %v737
      %v1298 = vmul.f32 %v1076, %v1076
      %v1299 = vmul.f32 %v740, %v740
      %v1300 = vmul.f32 %v1079, %v1079
      %v1301 = vmul.f32 %v743, %v743
      %v1302 = vmul.f32 %v1082, %v1082
      %v1303 = vmul.f32 %v746, %v746
      %v1304 = vmul.f32 %v1085, %v1085
      %v1305 = vmul.f32 %v749, %v749
      %v1306 = vmul.f32 %v1088, %v1088
      %v1307 = vmul.f32 %v752, %v752
      %v1308 = vmul.f32 %v1091, %v1091
      %v1309 = vmul.f32 %v755, %v755
      %v1310 = vmul.f32 %v1094, %v1094
      %v1311 = vmul.f32 %v758, %v758
      %v1312 = vmul.f32 %v1097, %v1097
      %v1313 = vmul.f32 %v761, %v761
      %v1314 = vmul.f32 %v1100, %v1100
      %v1315 = vmul.f32 %v764, %v764
      %v1316 = vmul.f32 %v1103, %v1103
      %v1317 = vmul.f32 %v767, %v767
      %v1318 = vmul.f32 %v1106, %v1106
      %v1319 = vmul.f32 %v770, %v770
      %v1320 = vmul.f32 %v1109, %v1109
      %v1321 = vmul.f32 %v773, %v773
      %v1322 = vmul.f32 %v1112, %v1112
      %v1323 = vmul.f32 %v776, %v776
      %v1324 = vmul.f32 %v1115, %v1115
      %v1325 = vmul.f32 %v779, %v779
      %v1326 = vmul.f32 %v1118, %v1118
      %v1327 = vmul.f32 %v782, %v782
      %v1328 = vmul.f32 %v1121, %v1121
      %v1329 = vmul.f32 %v785, %v785
      %v1330 = vmul.f32 %v1124, %v1124
      %v1331 = vmul.f32 %v788, %v788
      %v1332 = vmul.f32 %v1127, %v1127
      %v1333 = vmul.f32 %v791, %v791
      %v1334 = vmul.f32 %v1130, %v1130
      %v1335 = vmul.f32 %v794, %v794
      %v1336 = vmul.f32 %v1133, %v1133
      %v1337 = vadd.f32 %v1273, %v1275
      %v1338 = vadd.f32 %v1337, %v1277
      %v1339 = vadd.f32 %v1338, %v1279
      %v1340 = vadd.f32 %v1339, %v1281
      %v1341 = vadd.f32 %v1340, %v1283
      %v1342 = vadd.f32 %v1341, %v1285
      %v1343 = vadd.f32 %v1342, %v1287
      %v1344 = vadd.f32 %v1343, %v1289
      %v1345 = vadd.f32 %v1344, %v1291
      %v1346 = vadd.f32 %v1345, %v1293
      %v1347 = vadd.f32 %v1346, %v1295
      %v1348 = vadd.f32 %v1347, %v1297
      %v1349 = vadd.f32 %v1348, %v1299
      %v1350 = vadd.f32 %v1349, %v1301
      %v1351 = vadd.f32 %v1350, %v1303
      %v1352 = vadd.f32 %v1351, %v1305
      %v1353 = vadd.f32 %v1352, %v1307
      %v1354 = vadd.f32 %v1353, %v1309
      %v1355 = vadd.f32 %v1354, %v1311
      %v1356 = vadd.f32 %v1355, %v1313
      %v1357 = vadd.f32 %v1356, %v1315
      %v1358 = vadd.f32 %v1357, %v1317
      %v1359 = vadd.f32 %v1358, %v1319
      %v1360 = vadd.f32 %v1359, %v1321
      %v1361 = vadd.f32 %v1360, %v1323
      %v1362 = vadd.f32 %v1361, %v1325
      %v1363 = vadd.f32 %v1362, %v1327
      %v1364 = vadd.f32 %v1363, %v1329
      %v1365 = vadd.f32 %v1364, %v1331
      %v1366 = vadd.f32 %v1365, %v1333
      %v1367 = vadd.f32 %v1366, %v1335
      %v1368 = vrot.slane %v1367, 4
      %v1369 = vadd.f32 %v1367, %v1368
      %v1370 = vrot.slane %v1369, 2
      %v1371 = vadd.f32 %v1369, %v1370
      %v1372 = vrot.slane %v1371, 1
      %v1373 = vadd.f32 %v1371, %v1372
      %v1374 = vadd.f32 %v1274, %v1276
      %v1375 = vadd.f32 %v1374, %v1278
      %v1376 = vadd.f32 %v1375, %v1280
      %v1377 = vadd.f32 %v1376, %v1282
      %v1378 = vadd.f32 %v1377, %v1284
      %v1379 = vadd.f32 %v1378, %v1286
      %v1380 = vadd.f32 %v1379, %v1288
      %v1381 = vadd.f32 %v1380, %v1290
      %v1382 = vadd.f32 %v1381, %v1292
      %v1383 = vadd.f32 %v1382, %v1294
      %v1384 = vadd.f32 %v1383, %v1296
      %v1385 = vadd.f32 %v1384, %v1298
      %v1386 = vadd.f32 %v1385, %v1300
      %v1387 = vadd.f32 %v1386, %v1302
      %v1388 = vadd.f32 %v1387, %v1304
      %v1389 = vadd.f32 %v1388, %v1306
      %v1390 = vadd.f32 %v1389, %v1308
      %v1391 = vadd.f32 %v1390, %v1310
      %v1392 = vadd.f32 %v1391, %v1312
      %v1393 = vadd.f32 %v1392, %v1314
      %v1394 = vadd.f32 %v1393, %v1316
      %v1395 = vadd.f32 %v1394, %v1318
      %v1396 = vadd.f32 %v1395, %v1320
      %v1397 = vadd.f32 %v1396, %v1322
      %v1398 = vadd.f32 %v1397, %v1324
      %v1399 = vadd.f32 %v1398, %v1326
      %v1400 = vadd.f32 %v1399, %v1328
      %v1401 = vadd.f32 %v1400, %v1330
      %v1402 = vadd.f32 %v1401, %v1332
      %v1403 = vadd.f32 %v1402, %v1334
      %v1404 = vadd.f32 %v1403, %v1336
      %v1405 = vrot.slane %v1404, 4
      %v1406 = vadd.f32 %v1404, %v1405
      %v1407 = vrot.slane %v1406, 2
      %v1408 = vadd.f32 %v1406, %v1407
      %v1409 = vrot.slane %v1408, 1
      %v1410 = vadd.f32 %v1408, %v1409
      %vm1411 = vcmask 1040384
      %v1412 = vsel %vm1411, %v1235, %v1373
      %v1413 = vsel %vm1411, %v1272, %v1410
      %v1416 = vrot.slane %v1413, 6
      %vm1417 = vcmask 1041408
      %v1418 = vsel %vm1417, %v1412, %v1416
      %1420 = vst [vmem:[%s191] sm:$0xf] %v1418
      %s1421 = smul.u32 32, %s15
      %p1422 = scmp.lt.s32.totalorder %s1421, 63
      %s1423 = scalar_select %p1422, %s1421, 63
      %s1424 = smul.addr %s1423, 2
      %s1425 = smul.addr %s1424, 8
      %s1426 = scalar_lea.vmem %s2, %s1425
      %p1427 = scmp.lt.s32.totalorder %s15, 1
      %s1428 = scalar_select %p1427, %s15, 1
      %s1429 = smul.addr %s1428, 2
      %s1430 = smul.addr %s1429, 2
      %s1431 = scalar_lea.vmem %s3, %s1430
      // Predicated region
      $region29: #{upconv_forward.2} parent=27 // pred_check
        %p1432 = pneg %p80
      $region30: #{upconv_forward.2} parent=27 // pred_check_branch
        %1434 = sbr.rel (%p1432) target = $region32
      $region31: #{upconv_forward.2} parent=27 // pred_region
        %s1435 = smul.u32 32, %s15
      $region32: #{upconv_forward.2} parent=27 // pred_fallthru
        _
      // Predicated region
      $region33: #{upconv_forward.2} parent=27 // pred_check
        %p1436 = pneg %p106
      $region34: #{upconv_forward.2} parent=27 // pred_check_branch
        %1438 = sbr.rel (%p1436) target = $region36
      $region35: #{upconv_forward.2} parent=27 // pred_region
        _
      $region36: #{upconv_forward.2} parent=27 // pred_fallthru
        _
    $region28: #{upconv_forward.2} parent=5 // pred_fallthru
      _
    %p1439 = scmp.le.s32.totalorder 2, %s10
    // Predicated region
    $region37: #{upconv_forward.2} parent=5 // pred_check
      %p1440 = pneg %p1439
    $region38: #{upconv_forward.2} parent=5 // pred_check_branch
      %1442 = sbr.rel (%p1440) target = $region40
    $region39: #{upconv_forward.2} parent=5 // pred_region
      %s1443 = ssub.s32 %s10, 2
      // Predicated region
      $region41: #{upconv_forward.2} parent=39 // pred_check
        %p1444 = pneg %p86
      $region42: #{upconv_forward.2} parent=39 // pred_check_branch
        %1446 = sbr.rel (%p1444) target = $region44
      $region43: #{upconv_forward.2} parent=39 // pred_region
        %s1447 = smul.u32 32, %s16
        %p1448 = scmp.lt.s32.totalorder %s1447, 63
        %s1449 = scalar_select %p1448, %s1447, 63
        %s1450 = smul.addr %s1449, 2
        %s1451 = smul.addr %s1450, 8
        %s1452 = scalar_lea.vmem %s2, %s1451
      $region44: #{upconv_forward.2} parent=39 // pred_fallthru
        _
      // Predicated region
      $region45: #{upconv_forward.2} parent=39 // pred_check
        %p1453 = pneg %p112
      $region46: #{upconv_forward.2} parent=39 // pred_check_branch
        %1455 = sbr.rel (%p1453) target = $region48
      $region47: #{upconv_forward.2} parent=39 // pred_region
        %p1456 = scmp.lt.s32.totalorder %s16, 1
        %s1457 = scalar_select %p1456, %s16, 1
        %s1458 = smul.addr %s1457, 2
        %s1459 = smul.addr %s1458, 2
        %s1460 = scalar_lea.vmem %s3, %s1459
      $region48: #{upconv_forward.2} parent=39 // pred_fallthru
        _
    $region40: #{upconv_forward.2} parent=5 // pred_fallthru
      _
  $region6: #{upconv_forward.2} parent=0 // loop_footer
    %s14 = sadd.s32 1, %s10
  $region7: #{upconv_forward.2} parent=0 // loop_footer_branch
    %9 = sbr.rel target = $region3
  $region8: #{upconv_forward.2} parent=0 // loop_exit
    _

</llo_original>
